<compile_context>
chip_gen: v6e
topology: v6e:2x2x1
jax: 0.10.0
libtpu: 0.0.40
codegen_flags: <defaults>
</compile_context>

<pallas_src>
import jax
import jax.numpy as jnp
from jax.experimental import pallas as pl
from jax.experimental.pallas import tpu as pltpu

OUT_LANES = 128  # lane-dense output width (>= 3, multiple of 128)


# ---------------------------------------------------------------------------
# Kernel
# ---------------------------------------------------------------------------
def _classifier_kernel(
    x_ref,                    # (TB, D)        bf16
    w1_ref, b1_ref,           # shared Linear(D, 300)     (bf16 W, f32 b)
    w2_ref, b2_ref,           # shared Linear(300, 100)
    hw1_ref, hb1_ref,         # fused head layer 1: (100, 120)
    hw2_ref, hb2_ref,         # fused block-diag head layer 2: (120, 60)
    hw3_ref, hb3_ref,         # fused block-diag head layer 3: (60, 128) lane-padded
    out_ref,                  # (TB, 128)      f32
):
    compute_dtype = x_ref.dtype

    def layer(h, w_ref, b_ref, relu=True):
        # bf16 x bf16 -> f32 accumulate on the MXU; bias/ReLU in f32 (VPU).
        acc = jnp.dot(h, w_ref[...], preferred_element_type=jnp.float32) + b_ref[...]
        if relu:
            acc = jnp.maximum(acc, 0.0)
        return acc

    x = x_ref[...]
    # Shared trunk: Linear -> ReLU -> (Dropout=id) -> Linear -> ReLU -> (Dropout=id)
    h = layer(x, w1_ref, b1_ref).astype(compute_dtype)
    h = layer(h, w2_ref, b2_ref).astype(compute_dtype)
    # Three heads fused into wide / block-diagonal matmuls
    a = layer(h, hw1_ref, hb1_ref).astype(compute_dtype)
    a = layer(a, hw2_ref, hb2_ref).astype(compute_dtype)
    out_ref[...] = layer(a, hw3_ref, hb3_ref, relu=False).astype(out_ref.dtype)


# ---------------------------------------------------------------------------
# Parameter packing (22 per-layer tensors -> 10 fused buffers)
# ---------------------------------------------------------------------------
def pack_params(params, *, compute_dtype=jnp.bfloat16):
    (w1, b1, w2, b2,
     a1w1, a1b1, a1w2, a1b2, a1w3, a1b3,
     a2w1, a2b1, a2w2, a2b2, a2w3, a2b3,
     a3w1, a3b1, a3w2, a3b2, a3w3, a3b3) = params

    def block_diag(blocks):
        rows = sum(b.shape[0] for b in blocks)
        cols = sum(b.shape[1] for b in blocks)
        out = jnp.zeros((rows, cols), jnp.float32)
        r = c = 0
        for b in blocks:
            out = out.at[r:r + b.shape[0], c:c + b.shape[1]].set(b)
            r += b.shape[0]
            c += b.shape[1]
        return out

    hw1 = jnp.concatenate([a1w1, a2w1, a3w1], axis=1)   # (100, 120)
    hb1 = jnp.concatenate([a1b1, a2b1, a3b1], axis=1)   # (1, 120)
    hw2 = block_diag([a1w2, a2w2, a3w2])                # (120, 60), exact zeros off-diag
    hb2 = jnp.concatenate([a1b2, a2b2, a3b2], axis=1)   # (1, 60)
    hw3 = block_diag([a1w3, a2w3, a3w3])                # (60, 3)
    hb3 = jnp.concatenate([a1b3, a2b3, a3b3], axis=1)   # (1, 3)

    # Lane-dense output: pad the final layer to 128 output columns with exact
    # zeros so the kernel stores an unmasked (tb, 128) tile.
    hw3 = jnp.pad(hw3, ((0, 0), (0, OUT_LANES - hw3.shape[1])))   # (60, 128)
    hb3 = jnp.pad(hb3, ((0, 0), (0, OUT_LANES - hb3.shape[1])))   # (1, 128)

    f32 = jnp.float32
    return (w1.astype(compute_dtype), b1.astype(f32),
            w2.astype(compute_dtype), b2.astype(f32),
            hw1.astype(compute_dtype), hb1.astype(f32),
            hw2.astype(compute_dtype), hb2.astype(f32),
            hw3.astype(compute_dtype), hb3.astype(f32))


# ---------------------------------------------------------------------------
# Batch-grid heuristic
# ---------------------------------------------------------------------------
def _round_up(x, m):
    return ((x + m - 1) // m) * m


def _choose_grid(B, max_batch_tile):
    """Returns (batch_tile, padded_batch, n_steps).

    For B > 256 we force an even number of grid steps (>= 2) so that
    dimension_semantics=("parallel",) shards the batch evenly across v7x's
    two TensorCores; tiny batches stay single-block (each grid step costs
    ~0.35 us of pipeline overhead).
    """
    max_batch_tile = max(8, _round_up(max_batch_tile, 8))
    if B <= 256 and B <= max_batch_tile:
        tb = _round_up(max(B, 8), 8)
        return tb, tb, 1
    # Even step count; each tile <= max_batch_tile, rounded to the sublane (8).
    n = 2 * (-(-B // (2 * max_batch_tile)))
    tb = min(max_batch_tile, _round_up(-(-B // n), 8))
    return tb, n * tb, n


# ---------------------------------------------------------------------------
# Wrapper
# ---------------------------------------------------------------------------
def classifier_forward(x, params, *, max_batch_tile=2048,
                       compute_dtype=jnp.bfloat16):
    """Returns (out1, out2, out3), each (B, 1) f32, matching the PyTorch module."""
    x = jnp.asarray(x)
    B, D = x.shape
    packed = pack_params(params, compute_dtype=compute_dtype)
    x = x.astype(compute_dtype)

    tb, b_padded, n_steps = _choose_grid(B, max_batch_tile)
    if b_padded != B:
        x = jnp.pad(x, ((0, b_padded - B), (0, 0)))
    grid = (n_steps,)

    flops = 2 * b_padded * (D * 300 + 300 * 100 + 100 * 120 + 120 * 60 + 60 * OUT_LANES)
    bytes_accessed = (b_padded * D * x.dtype.itemsize
                      + sum(int(p.size) * p.dtype.itemsize for p in packed)
                      + b_padded * OUT_LANES * 4)
    cost = pl.CostEstimate(flops=flops, transcendentals=0,
                           bytes_accessed=bytes_accessed)

    def build(single_buffer_weights):
        in_specs = [pl.BlockSpec((tb, D), lambda i: (i, 0))]
        for p in packed:
            # Constant block index keeps the ~130 KB of weights VMEM-resident
            # across grid steps.
            kwargs = {}
            if single_buffer_weights:
                kwargs["pipeline_mode"] = pl.Buffered(1)
            in_specs.append(
                pl.BlockSpec(p.shape, (lambda i, _nd=p.ndim: (0,) * _nd), **kwargs))
        out_spec = pl.BlockSpec((tb, OUT_LANES), lambda i: (i, 0))
        return pl.pallas_call(
            _classifier_kernel,
            out_shape=jax.ShapeDtypeStruct((b_padded, OUT_LANES), jnp.float32),
            grid=grid,
            in_specs=in_specs,
            out_specs=out_spec,
            compiler_params=pltpu.CompilerParams(
                dimension_semantics=("parallel",)),
            cost_estimate=cost,
        )

    try:
        out = build(True)(x, *packed)
    except Exception:
        # Fallback: this JAX version rejects single-buffered constant blocks;
        # default double-buffering is still correct (minor VMEM overhead).
        out = build(False)(x, *packed)

    out = out[:B, :3].astype(jnp.float32)
    return out[:, 0:1], out[:, 1:2], out[:, 2:3]


# ---------------------------------------------------------------------------
# Deterministic init mimicking nn.Linear: U(-1/sqrt(fan_in), 1/sqrt(fan_in))
# ---------------------------------------------------------------------------
def init_params(key, input_nodes):
    def linear_params(key, fan_in, fan_out):
        kw, kb = jax.random.split(key)
        bound = 1.0 / jnp.sqrt(jnp.float32(fan_in))
        w = jax.random.uniform(kw, (fan_in, fan_out), jnp.float32, -bound, bound)
        b = jax.random.uniform(kb, (1, fan_out), jnp.float32, -bound, bound)
        return w, b

    dims_shared = [(input_nodes, 300), (300, 100)]
    dims_head = [(100, 40), (40, 20), (20, 1)]

    params = []
    for (fi, fo) in dims_shared:
        key, sub = jax.random.split(key)
        params.extend(linear_params(sub, fi, fo))
    for _head in range(3):
        for (fi, fo) in dims_head:
            key, sub = jax.random.split(key)
            params.extend(linear_params(sub, fi, fo))
    return tuple(params)


# ---------------------------------------------------------------------------
# References for correctness checks
# ---------------------------------------------------------------------------
def reference_forward(x, params):
    """Pure-JAX f32, unfused (ground truth up to bf16 quantization)."""
    (w1, b1, w2, b2,
     a1w1, a1b1, a1w2, a1b2, a1w3, a1b3,
     a2w1, a2b1, a2w2, a2b2, a2w3, a2b3,
     a3w1, a3b1, a3w2, a3b2, a3w3, a3b3) = params
    x = jnp.asarray(x, jnp.float32)
    h = jnp.maximum(x @ w1 + b1, 0.0)
    h = jnp.maximum(h @ w2 + b2, 0.0)

    def head(hs, wa, ba, wb, bb, wc, bc):
        a = jnp.maximum(hs @ wa + ba, 0.0)
        a = jnp.maximum(a @ wb + bb, 0.0)
        return a @ wc + bc

    return (head(h, a1w1, a1b1, a1w2, a1b2, a1w3, a1b3),
            head(h, a2w1, a2b1, a2w2, a2b2, a2w3, a2b3),
            head(h, a3w1, a3b1, a3w2, a3b2, a3w3, a3b3))


def reference_forward_packed(x, packed):
    """Pure-JAX using the same packed (bf16) params as the kernel."""
    (w1, b1, w2, b2, hw1, hb1, hw2, hb2, hw3, hb3) = packed
    cd = w1.dtype

    def layer(h, w, b, relu=True):
        acc = jnp.dot(h.astype(cd), w, preferred_element_type=jnp.float32) + b
        return jnp.maximum(acc, 0.0) if relu else acc

    h = layer(jnp.asarray(x), w1, b1)
    h = layer(h, w2, b2)
    a = layer(h, hw1, hb1)
    a = layer(a, hw2, hb2)
    out = layer(a, hw3, hb3, relu=False)
    return out[:, 0:1], out[:, 1:2], out[:, 2:3]


if __name__ == "__main__":
    key = jax.random.PRNGKey(0)
    k_x, k_p, k_x2 = jax.random.split(key, 3)

    input_nodes = 32
    params = init_params(k_p, input_nodes)
    packed = pack_params(params)

    # ---- Small test (single-block path) --------------------------------
    B = 2
    x = jax.random.normal(k_x, (B, input_nodes), dtype=jnp.float32)
    out1, out2, out3 = classifier_forward(x, params)
    jax.block_until_ready((out1, out2, out3))
    assert out1.shape == (B, 1) and out2.shape == (B, 1) and out3.shape == (B, 1)

    # Tight check vs pure-JAX with identical bf16 packed params.
    p1, p2, p3 = reference_forward_packed(x, packed)
    assert jnp.allclose(out1, p1, atol=2e-3, rtol=2e-3)
    assert jnp.allclose(out2, p2, atol=2e-3, rtol=2e-3)
    assert jnp.allclose(out3, p3, atol=2e-3, rtol=2e-3)

    # Loose check vs full-f32 unfused reference (bf16 quantization error).
    r1, r2, r3 = reference_forward(x, params)
    assert jnp.allclose(out1, r1, atol=5e-2, rtol=5e-2)
    assert jnp.allclose(out2, r2, atol=5e-2, rtol=5e-2)
    assert jnp.allclose(out3, r3, atol=5e-2, rtol=5e-2)

    # ---- Small test exercising the gridded / padded path ----------------
    # (max_batch_tile=8 is test-only; production tiles should stay >= ~512)
    B2 = 20
    x2 = jax.random.normal(k_x2, (B2, input_nodes), dtype=jnp.float32)
    o1, o2, o3 = classifier_forward(x2, params, max_batch_tile=8)
    jax.block_until_ready((o1, o2, o3))
    q1, q2, q3 = reference_forward_packed(x2, packed)
    assert jnp.allclose(o1, q1, atol=2e-3, rtol=2e-3)
    assert jnp.allclose(o2, q2, atol=2e-3, rtol=2e-3)
    assert jnp.allclose(o3, q3, atol=2e-3, rtol=2e-3)
    s1, s2, s3 = reference_forward(x2, params)
    assert jnp.allclose(o1, s1, atol=5e-2, rtol=5e-2)
    assert jnp.allclose(o2, s2, atol=5e-2, rtol=5e-2)
    assert jnp.allclose(o3, s3, atol=5e-2, rtol=5e-2)

    print("KERNEL_OK")
</pallas_src>

<mosaic_0001>
module attributes {stable_mosaic.version = 11 : i64} {
  func.func @_classifier_kernel(%arg0: i32, %arg1: memref<8x32xbf16, #tpu.memory_space<vmem>>, %arg2: memref<32x300xbf16, #tpu.memory_space<vmem>>, %arg3: memref<1x300xf32, #tpu.memory_space<vmem>>, %arg4: memref<300x100xbf16, #tpu.memory_space<vmem>>, %arg5: memref<1x100xf32, #tpu.memory_space<vmem>>, %arg6: memref<100x120xbf16, #tpu.memory_space<vmem>>, %arg7: memref<1x120xf32, #tpu.memory_space<vmem>>, %arg8: memref<120x60xbf16, #tpu.memory_space<vmem>>, %arg9: memref<1x60xf32, #tpu.memory_space<vmem>>, %arg10: memref<60x128xbf16, #tpu.memory_space<vmem>>, %arg11: memref<1x128xf32, #tpu.memory_space<vmem>>, %arg12: memref<8x128xf32, #tpu.memory_space<vmem>>) attributes {dimension_semantics = [#tpu.dimension_semantics<parallel>], iteration_bounds = array<i64: 1>, scalar_prefetch = 0 : i64, scratch_operands = 0 : i64, tpu.core_type = #tpu.core_type<tc>, window_params = [{transform_indices = @transform_0, window_bounds = array<i64: 8, 32>}, {pipeline_mode = #tpu.pipeline_mode<synchronous>, transform_indices = @transform_1, window_bounds = array<i64: 32, 300>}, {pipeline_mode = #tpu.pipeline_mode<synchronous>, transform_indices = @transform_2, window_bounds = array<i64: 1, 300>}, {pipeline_mode = #tpu.pipeline_mode<synchronous>, transform_indices = @transform_3, window_bounds = array<i64: 300, 100>}, {pipeline_mode = #tpu.pipeline_mode<synchronous>, transform_indices = @transform_4, window_bounds = array<i64: 1, 100>}, {pipeline_mode = #tpu.pipeline_mode<synchronous>, transform_indices = @transform_5, window_bounds = array<i64: 100, 120>}, {pipeline_mode = #tpu.pipeline_mode<synchronous>, transform_indices = @transform_6, window_bounds = array<i64: 1, 120>}, {pipeline_mode = #tpu.pipeline_mode<synchronous>, transform_indices = @transform_7, window_bounds = array<i64: 120, 60>}, {pipeline_mode = #tpu.pipeline_mode<synchronous>, transform_indices = @transform_8, window_bounds = array<i64: 1, 60>}, {pipeline_mode = #tpu.pipeline_mode<synchronous>, transform_indices = @transform_9, window_bounds = array<i64: 60, 128>}, {pipeline_mode = #tpu.pipeline_mode<synchronous>, transform_indices = @transform_10, window_bounds = array<i64: 1, 128>}, {transform_indices = @transform_11, window_bounds = array<i64: 8, 128>}]} {
    %c0 = arith.constant 0 : index
    %c0_0 = arith.constant 0 : index
    %0 = vector.load %arg1[%c0, %c0_0] : memref<8x32xbf16, #tpu.memory_space<vmem>>, vector<8x32xbf16>
    %c0_1 = arith.constant 0 : index
    %c0_2 = arith.constant 0 : index
    %1 = vector.load %arg2[%c0_1, %c0_2] : memref<32x300xbf16, #tpu.memory_space<vmem>>, vector<32x300xbf16>
    %cst = arith.constant dense<0.000000e+00> : vector<8x300xf32>
    %2 = tpu.matmul %0, %1, %cst {dimension_numbers = #tpu.dot_dimension_numbers<[1], [0], [0], [1], [0, 0, 1, 1], [], []>} : vector<8x32xbf16>, vector<32x300xbf16>, vector<8x300xf32> -> vector<8x300xf32>
    %c0_3 = arith.constant 0 : index
    %c0_4 = arith.constant 0 : index
    %3 = vector.load %arg3[%c0_3, %c0_4] : memref<1x300xf32, #tpu.memory_space<vmem>>, vector<1x300xf32>
    %4 = vector.broadcast %3 : vector<1x300xf32> to vector<8x300xf32>
    %5 = arith.addf %2, %4 : vector<8x300xf32>
    %cst_5 = arith.constant 0.000000e+00 : f32
    %6 = vector.broadcast %cst_5 : f32 to vector<8x300xf32>
    %7 = arith.maximumf %5, %6 : vector<8x300xf32>
    %8 = arith.truncf %7 : vector<8x300xf32> to vector<8x300xbf16>
    %c0_6 = arith.constant 0 : index
    %c0_7 = arith.constant 0 : index
    %9 = vector.load %arg4[%c0_6, %c0_7] : memref<300x100xbf16, #tpu.memory_space<vmem>>, vector<300x100xbf16>
    %cst_8 = arith.constant dense<0.000000e+00> : vector<8x100xf32>
    %10 = tpu.matmul %8, %9, %cst_8 {dimension_numbers = #tpu.dot_dimension_numbers<[1], [0], [0], [1], [0, 0, 1, 1], [], []>} : vector<8x300xbf16>, vector<300x100xbf16>, vector<8x100xf32> -> vector<8x100xf32>
    %c0_9 = arith.constant 0 : index
    %c0_10 = arith.constant 0 : index
    %11 = vector.load %arg5[%c0_9, %c0_10] : memref<1x100xf32, #tpu.memory_space<vmem>>, vector<1x100xf32>
    %12 = vector.broadcast %11 : vector<1x100xf32> to vector<8x100xf32>
    %13 = arith.addf %10, %12 : vector<8x100xf32>
    %cst_11 = arith.constant 0.000000e+00 : f32
    %14 = vector.broadcast %cst_11 : f32 to vector<8x100xf32>
    %15 = arith.maximumf %13, %14 : vector<8x100xf32>
    %16 = arith.truncf %15 : vector<8x100xf32> to vector<8x100xbf16>
    %c0_12 = arith.constant 0 : index
    %c0_13 = arith.constant 0 : index
    %17 = vector.load %arg6[%c0_12, %c0_13] : memref<100x120xbf16, #tpu.memory_space<vmem>>, vector<100x120xbf16>
    %cst_14 = arith.constant dense<0.000000e+00> : vector<8x120xf32>
    %18 = tpu.matmul %16, %17, %cst_14 {dimension_numbers = #tpu.dot_dimension_numbers<[1], [0], [0], [1], [0, 0, 1, 1], [], []>} : vector<8x100xbf16>, vector<100x120xbf16>, vector<8x120xf32> -> vector<8x120xf32>
    %c0_15 = arith.constant 0 : index
    %c0_16 = arith.constant 0 : index
    %19 = vector.load %arg7[%c0_15, %c0_16] : memref<1x120xf32, #tpu.memory_space<vmem>>, vector<1x120xf32>
    %20 = vector.broadcast %19 : vector<1x120xf32> to vector<8x120xf32>
    %21 = arith.addf %18, %20 : vector<8x120xf32>
    %cst_17 = arith.constant 0.000000e+00 : f32
    %22 = vector.broadcast %cst_17 : f32 to vector<8x120xf32>
    %23 = arith.maximumf %21, %22 : vector<8x120xf32>
    %24 = arith.truncf %23 : vector<8x120xf32> to vector<8x120xbf16>
    %c0_18 = arith.constant 0 : index
    %c0_19 = arith.constant 0 : index
    %25 = vector.load %arg8[%c0_18, %c0_19] : memref<120x60xbf16, #tpu.memory_space<vmem>>, vector<120x60xbf16>
    %cst_20 = arith.constant dense<0.000000e+00> : vector<8x60xf32>
    %26 = tpu.matmul %24, %25, %cst_20 {dimension_numbers = #tpu.dot_dimension_numbers<[1], [0], [0], [1], [0, 0, 1, 1], [], []>} : vector<8x120xbf16>, vector<120x60xbf16>, vector<8x60xf32> -> vector<8x60xf32>
    %c0_21 = arith.constant 0 : index
    %c0_22 = arith.constant 0 : index
    %27 = vector.load %arg9[%c0_21, %c0_22] : memref<1x60xf32, #tpu.memory_space<vmem>>, vector<1x60xf32>
    %28 = vector.broadcast %27 : vector<1x60xf32> to vector<8x60xf32>
    %29 = arith.addf %26, %28 : vector<8x60xf32>
    %cst_23 = arith.constant 0.000000e+00 : f32
    %30 = vector.broadcast %cst_23 : f32 to vector<8x60xf32>
    %31 = arith.maximumf %29, %30 : vector<8x60xf32>
    %32 = arith.truncf %31 : vector<8x60xf32> to vector<8x60xbf16>
    %c0_24 = arith.constant 0 : index
    %c0_25 = arith.constant 0 : index
    %33 = vector.load %arg10[%c0_24, %c0_25] : memref<60x128xbf16, #tpu.memory_space<vmem>>, vector<60x128xbf16>
    %cst_26 = arith.constant dense<0.000000e+00> : vector<8x128xf32>
    %34 = tpu.matmul %32, %33, %cst_26 {dimension_numbers = #tpu.dot_dimension_numbers<[1], [0], [0], [1], [0, 0, 1, 1], [], []>} : vector<8x60xbf16>, vector<60x128xbf16>, vector<8x128xf32> -> vector<8x128xf32>
    %c0_27 = arith.constant 0 : index
    %c0_28 = arith.constant 0 : index
    %35 = vector.load %arg11[%c0_27, %c0_28] : memref<1x128xf32, #tpu.memory_space<vmem>>, vector<1x128xf32>
    %36 = vector.broadcast %35 : vector<1x128xf32> to vector<8x128xf32>
    %37 = arith.addf %34, %36 : vector<8x128xf32>
    %c0_29 = arith.constant 0 : index
    %c0_30 = arith.constant 0 : index
    %38 = vector.load %arg12[%c0_29, %c0_30] : memref<8x128xf32, #tpu.memory_space<vmem>>, vector<8x128xf32>
    tpu.vector_store %arg12[%c0_29, %c0_30], %37 {strides = array<i32>} : memref<8x128xf32, #tpu.memory_space<vmem>>, vector<8x128xf32>,
    return
  }
  func.func @transform_0(%arg0: i32) -> (i32, i32) {
    %c0_i32 = arith.constant 0 : i32
    %c0_i32_0 = arith.constant 0 : i32
    return %arg0, %c0_i32 : i32, i32
  }
  func.func @transform_1(%arg0: i32) -> (i32, i32) {
    %c0_i32 = arith.constant 0 : i32
    %c0_i32_0 = arith.constant 0 : i32
    %c0_i32_1 = arith.constant 0 : i32
    return %c0_i32, %c0_i32_0 : i32, i32
  }
  func.func @transform_2(%arg0: i32) -> (i32, i32) {
    %c0_i32 = arith.constant 0 : i32
    %c0_i32_0 = arith.constant 0 : i32
    %c0_i32_1 = arith.constant 0 : i32
    return %c0_i32, %c0_i32_0 : i32, i32
  }
  func.func @transform_3(%arg0: i32) -> (i32, i32) {
    %c0_i32 = arith.constant 0 : i32
    %c0_i32_0 = arith.constant 0 : i32
    %c0_i32_1 = arith.constant 0 : i32
    return %c0_i32, %c0_i32_0 : i32, i32
  }
  func.func @transform_4(%arg0: i32) -> (i32, i32) {
    %c0_i32 = arith.constant 0 : i32
    %c0_i32_0 = arith.constant 0 : i32
    %c0_i32_1 = arith.constant 0 : i32
    return %c0_i32, %c0_i32_0 : i32, i32
  }
  func.func @transform_5(%arg0: i32) -> (i32, i32) {
    %c0_i32 = arith.constant 0 : i32
    %c0_i32_0 = arith.constant 0 : i32
    %c0_i32_1 = arith.constant 0 : i32
    return %c0_i32, %c0_i32_0 : i32, i32
  }
  func.func @transform_6(%arg0: i32) -> (i32, i32) {
    %c0_i32 = arith.constant 0 : i32
    %c0_i32_0 = arith.constant 0 : i32
    %c0_i32_1 = arith.constant 0 : i32
    return %c0_i32, %c0_i32_0 : i32, i32
  }
  func.func @transform_7(%arg0: i32) -> (i32, i32) {
    %c0_i32 = arith.constant 0 : i32
    %c0_i32_0 = arith.constant 0 : i32
    %c0_i32_1 = arith.constant 0 : i32
    return %c0_i32, %c0_i32_0 : i32, i32
  }
  func.func @transform_8(%arg0: i32) -> (i32, i32) {
    %c0_i32 = arith.constant 0 : i32
    %c0_i32_0 = arith.constant 0 : i32
    %c0_i32_1 = arith.constant 0 : i32
    return %c0_i32, %c0_i32_0 : i32, i32
  }
  func.func @transform_9(%arg0: i32) -> (i32, i32) {
    %c0_i32 = arith.constant 0 : i32
    %c0_i32_0 = arith.constant 0 : i32
    %c0_i32_1 = arith.constant 0 : i32
    return %c0_i32, %c0_i32_0 : i32, i32
  }
  func.func @transform_10(%arg0: i32) -> (i32, i32) {
    %c0_i32 = arith.constant 0 : i32
    %c0_i32_0 = arith.constant 0 : i32
    %c0_i32_1 = arith.constant 0 : i32
    return %c0_i32, %c0_i32_0 : i32, i32
  }
  func.func @transform_11(%arg0: i32) -> (i32, i32) {
    %c0_i32 = arith.constant 0 : i32
    %c0_i32_0 = arith.constant 0 : i32
    return %arg0, %c0_i32 : i32, i32
  }
}

module attributes {stable_mosaic.version = 11 : i64} {
  func.func @_classifier_kernel(%arg0: i32, %arg1: memref<8x32xbf16, #tpu.memory_space<vmem>>, %arg2: memref<32x300xbf16, #tpu.memory_space<vmem>>, %arg3: memref<1x300xf32, #tpu.memory_space<vmem>>, %arg4: memref<300x100xbf16, #tpu.memory_space<vmem>>, %arg5: memref<1x100xf32, #tpu.memory_space<vmem>>, %arg6: memref<100x120xbf16, #tpu.memory_space<vmem>>, %arg7: memref<1x120xf32, #tpu.memory_space<vmem>>, %arg8: memref<120x60xbf16, #tpu.memory_space<vmem>>, %arg9: memref<1x60xf32, #tpu.memory_space<vmem>>, %arg10: memref<60x128xbf16, #tpu.memory_space<vmem>>, %arg11: memref<1x128xf32, #tpu.memory_space<vmem>>, %arg12: memref<8x128xf32, #tpu.memory_space<vmem>>) attributes {dimension_semantics = [#tpu.dimension_semantics<parallel>], iteration_bounds = array<i64: 1>, scalar_prefetch = 0 : i64, scratch_operands = 0 : i64, tpu.core_type = #tpu.core_type<tc>, window_params = [{transform_indices = @transform_0, window_bounds = array<i64: 8, 32>}, {pipeline_mode = #tpu.pipeline_mode<synchronous>, transform_indices = @transform_1, window_bounds = array<i64: 32, 300>}, {pipeline_mode = #tpu.pipeline_mode<synchronous>, transform_indices = @transform_2, window_bounds = array<i64: 1, 300>}, {pipeline_mode = #tpu.pipeline_mode<synchronous>, transform_indices = @transform_3, window_bounds = array<i64: 300, 100>}, {pipeline_mode = #tpu.pipeline_mode<synchronous>, transform_indices = @transform_4, window_bounds = array<i64: 1, 100>}, {pipeline_mode = #tpu.pipeline_mode<synchronous>, transform_indices = @transform_5, window_bounds = array<i64: 100, 120>}, {pipeline_mode = #tpu.pipeline_mode<synchronous>, transform_indices = @transform_6, window_bounds = array<i64: 1, 120>}, {pipeline_mode = #tpu.pipeline_mode<synchronous>, transform_indices = @transform_7, window_bounds = array<i64: 120, 60>}, {pipeline_mode = #tpu.pipeline_mode<synchronous>, transform_indices = @transform_8, window_bounds = array<i64: 1, 60>}, {pipeline_mode = #tpu.pipeline_mode<synchronous>, transform_indices = @transform_9, window_bounds = array<i64: 60, 128>}, {pipeline_mode = #tpu.pipeline_mode<synchronous>, transform_indices = @transform_10, window_bounds = array<i64: 1, 128>}, {transform_indices = @transform_11, window_bounds = array<i64: 8, 128>}]} {
    %c0 = arith.constant 0 : index
    %c0_0 = arith.constant 0 : index
    %0 = vector.load %arg1[%c0, %c0_0] : memref<8x32xbf16, #tpu.memory_space<vmem>>, vector<8x32xbf16>
    %c0_1 = arith.constant 0 : index
    %c0_2 = arith.constant 0 : index
    %1 = vector.load %arg2[%c0_1, %c0_2] : memref<32x300xbf16, #tpu.memory_space<vmem>>, vector<32x300xbf16>
    %cst = arith.constant dense<0.000000e+00> : vector<8x300xf32>
    %2 = tpu.matmul %0, %1, %cst {dimension_numbers = #tpu.dot_dimension_numbers<[1], [0], [0], [1], [0, 0, 1, 1], [], []>} : vector<8x32xbf16>, vector<32x300xbf16>, vector<8x300xf32> -> vector<8x300xf32>
    %c0_3 = arith.constant 0 : index
    %c0_4 = arith.constant 0 : index
    %3 = vector.load %arg3[%c0_3, %c0_4] : memref<1x300xf32, #tpu.memory_space<vmem>>, vector<1x300xf32>
    %4 = vector.broadcast %3 : vector<1x300xf32> to vector<8x300xf32>
    %5 = arith.addf %2, %4 : vector<8x300xf32>
    %cst_5 = arith.constant 0.000000e+00 : f32
    %6 = vector.broadcast %cst_5 : f32 to vector<8x300xf32>
    %7 = arith.maximumf %5, %6 : vector<8x300xf32>
    %8 = arith.truncf %7 : vector<8x300xf32> to vector<8x300xbf16>
    %c0_6 = arith.constant 0 : index
    %c0_7 = arith.constant 0 : index
    %9 = vector.load %arg4[%c0_6, %c0_7] : memref<300x100xbf16, #tpu.memory_space<vmem>>, vector<300x100xbf16>
    %cst_8 = arith.constant dense<0.000000e+00> : vector<8x100xf32>
    %10 = tpu.matmul %8, %9, %cst_8 {dimension_numbers = #tpu.dot_dimension_numbers<[1], [0], [0], [1], [0, 0, 1, 1], [], []>} : vector<8x300xbf16>, vector<300x100xbf16>, vector<8x100xf32> -> vector<8x100xf32>
    %c0_9 = arith.constant 0 : index
    %c0_10 = arith.constant 0 : index
    %11 = vector.load %arg5[%c0_9, %c0_10] : memref<1x100xf32, #tpu.memory_space<vmem>>, vector<1x100xf32>
    %12 = vector.broadcast %11 : vector<1x100xf32> to vector<8x100xf32>
    %13 = arith.addf %10, %12 : vector<8x100xf32>
    %cst_11 = arith.constant 0.000000e+00 : f32
    %14 = vector.broadcast %cst_11 : f32 to vector<8x100xf32>
    %15 = arith.maximumf %13, %14 : vector<8x100xf32>
    %16 = arith.truncf %15 : vector<8x100xf32> to vector<8x100xbf16>
    %c0_12 = arith.constant 0 : index
    %c0_13 = arith.constant 0 : index
    %17 = vector.load %arg6[%c0_12, %c0_13] : memref<100x120xbf16, #tpu.memory_space<vmem>>, vector<100x120xbf16>
    %cst_14 = arith.constant dense<0.000000e+00> : vector<8x120xf32>
    %18 = tpu.matmul %16, %17, %cst_14 {dimension_numbers = #tpu.dot_dimension_numbers<[1], [0], [0], [1], [0, 0, 1, 1], [], []>} : vector<8x100xbf16>, vector<100x120xbf16>, vector<8x120xf32> -> vector<8x120xf32>
    %c0_15 = arith.constant 0 : index
    %c0_16 = arith.constant 0 : index
    %19 = vector.load %arg7[%c0_15, %c0_16] : memref<1x120xf32, #tpu.memory_space<vmem>>, vector<1x120xf32>
    %20 = vector.broadcast %19 : vector<1x120xf32> to vector<8x120xf32>
    %21 = arith.addf %18, %20 : vector<8x120xf32>
    %cst_17 = arith.constant 0.000000e+00 : f32
    %22 = vector.broadcast %cst_17 : f32 to vector<8x120xf32>
    %23 = arith.maximumf %21, %22 : vector<8x120xf32>
    %24 = arith.truncf %23 : vector<8x120xf32> to vector<8x120xbf16>
    %c0_18 = arith.constant 0 : index
    %c0_19 = arith.constant 0 : index
    %25 = vector.load %arg8[%c0_18, %c0_19] : memref<120x60xbf16, #tpu.memory_space<vmem>>, vector<120x60xbf16>
    %cst_20 = arith.constant dense<0.000000e+00> : vector<8x60xf32>
    %26 = tpu.matmul %24, %25, %cst_20 {dimension_numbers = #tpu.dot_dimension_numbers<[1], [0], [0], [1], [0, 0, 1, 1], [], []>} : vector<8x120xbf16>, vector<120x60xbf16>, vector<8x60xf32> -> vector<8x60xf32>
    %c0_21 = arith.constant 0 : index
    %c0_22 = arith.constant 0 : index
    %27 = vector.load %arg9[%c0_21, %c0_22] : memref<1x60xf32, #tpu.memory_space<vmem>>, vector<1x60xf32>
    %28 = vector.broadcast %27 : vector<1x60xf32> to vector<8x60xf32>
    %29 = arith.addf %26, %28 : vector<8x60xf32>
    %cst_23 = arith.constant 0.000000e+00 : f32
    %30 = vector.broadcast %cst_23 : f32 to vector<8x60xf32>
    %31 = arith.maximumf %29, %30 : vector<8x60xf32>
    %32 = arith.truncf %31 : vector<8x60xf32> to vector<8x60xbf16>
    %c0_24 = arith.constant 0 : index
    %c0_25 = arith.constant 0 : index
    %33 = vector.load %arg10[%c0_24, %c0_25] : memref<60x128xbf16, #tpu.memory_space<vmem>>, vector<60x128xbf16>
    %cst_26 = arith.constant dense<0.000000e+00> : vector<8x128xf32>
    %34 = tpu.matmul %32, %33, %cst_26 {dimension_numbers = #tpu.dot_dimension_numbers<[1], [0], [0], [1], [0, 0, 1, 1], [], []>} : vector<8x60xbf16>, vector<60x128xbf16>, vector<8x128xf32> -> vector<8x128xf32>
    %c0_27 = arith.constant 0 : index
    %c0_28 = arith.constant 0 : index
    %35 = vector.load %arg11[%c0_27, %c0_28] : memref<1x128xf32, #tpu.memory_space<vmem>>, vector<1x128xf32>
    %36 = vector.broadcast %35 : vector<1x128xf32> to vector<8x128xf32>
    %37 = arith.addf %34, %36 : vector<8x128xf32>
    %c0_29 = arith.constant 0 : index
    %c0_30 = arith.constant 0 : index
    %38 = vector.load %arg12[%c0_29, %c0_30] : memref<8x128xf32, #tpu.memory_space<vmem>>, vector<8x128xf32>
    tpu.vector_store %arg12[%c0_29, %c0_30], %37 {strides = array<i32>} : memref<8x128xf32, #tpu.memory_space<vmem>>, vector<8x128xf32>,
    return
  }
  func.func @transform_0(%arg0: i32) -> (i32, i32) {
    %c0_i32 = arith.constant 0 : i32
    %c0_i32_0 = arith.constant 0 : i32
    return %arg0, %c0_i32 : i32, i32
  }
  func.func @transform_1(%arg0: i32) -> (i32, i32) {
    %c0_i32 = arith.constant 0 : i32
    %c0_i32_0 = arith.constant 0 : i32
    %c0_i32_1 = arith.constant 0 : i32
    return %c0_i32, %c0_i32_0 : i32, i32
  }
  func.func @transform_2(%arg0: i32) -> (i32, i32) {
    %c0_i32 = arith.constant 0 : i32
    %c0_i32_0 = arith.constant 0 : i32
    %c0_i32_1 = arith.constant 0 : i32
    return %c0_i32, %c0_i32_0 : i32, i32
  }
  func.func @transform_3(%arg0: i32) -> (i32, i32) {
    %c0_i32 = arith.constant 0 : i32
    %c0_i32_0 = arith.constant 0 : i32
    %c0_i32_1 = arith.constant 0 : i32
    return %c0_i32, %c0_i32_0 : i32, i32
  }
  func.func @transform_4(%arg0: i32) -> (i32, i32) {
    %c0_i32 = arith.constant 0 : i32
    %c0_i32_0 = arith.constant 0 : i32
    %c0_i32_1 = arith.constant 0 : i32
    return %c0_i32, %c0_i32_0 : i32, i32
  }
  func.func @transform_5(%arg0: i32) -> (i32, i32) {
    %c0_i32 = arith.constant 0 : i32
    %c0_i32_0 = arith.constant 0 : i32
    %c0_i32_1 = arith.constant 0 : i32
    return %c0_i32, %c0_i32_0 : i32, i32
  }
  func.func @transform_6(%arg0: i32) -> (i32, i32) {
    %c0_i32 = arith.constant 0 : i32
    %c0_i32_0 = arith.constant 0 : i32
    %c0_i32_1 = arith.constant 0 : i32
    return %c0_i32, %c0_i32_0 : i32, i32
  }
  func.func @transform_7(%arg0: i32) -> (i32, i32) {
    %c0_i32 = arith.constant 0 : i32
    %c0_i32_0 = arith.constant 0 : i32
    %c0_i32_1 = arith.constant 0 : i32
    return %c0_i32, %c0_i32_0 : i32, i32
  }
  func.func @transform_8(%arg0: i32) -> (i32, i32) {
    %c0_i32 = arith.constant 0 : i32
    %c0_i32_0 = arith.constant 0 : i32
    %c0_i32_1 = arith.constant 0 : i32
    return %c0_i32, %c0_i32_0 : i32, i32
  }
  func.func @transform_9(%arg0: i32) -> (i32, i32) {
    %c0_i32 = arith.constant 0 : i32
    %c0_i32_0 = arith.constant 0 : i32
    %c0_i32_1 = arith.constant 0 : i32
    return %c0_i32, %c0_i32_0 : i32, i32
  }
  func.func @transform_10(%arg0: i32) -> (i32, i32) {
    %c0_i32 = arith.constant 0 : i32
    %c0_i32_0 = arith.constant 0 : i32
    %c0_i32_1 = arith.constant 0 : i32
    return %c0_i32, %c0_i32_0 : i32, i32
  }
  func.func @transform_11(%arg0: i32) -> (i32, i32) {
    %c0_i32 = arith.constant 0 : i32
    %c0_i32_0 = arith.constant 0 : i32
    return %arg0, %c0_i32 : i32, i32
  }
}

</mosaic_0001>

<llo_original>
// kernel: tpu_custom_call.1
$region0: #{tpu_custom_call.1}
  #allocation0 [shape = 'u32[]', space=smem, size = 0x4, offset = 0x4, fixed_abs, tag = 'smem constant byte address 0x4 - core index']
  #allocation1 [shape = 'u32[144,128]{1,0:T(1,128)}', space=vmem, size = 0x12000, scoped, tag = 'internal scratch']
  %s0 = inlined_call_operand.hbm [shape: bf16[8,32], index: 0, kind: input, shape index: {}]
  %s1 = inlined_call_operand.vmem [shape: bf16[32,300], index: 1, kind: input, shape index: {}]
  %s2 = inlined_call_operand.hbm [shape: f32[1,300], index: 2, kind: input, shape index: {}]
  %s3 = inlined_call_operand.hbm [shape: bf16[300,100], index: 3, kind: input, shape index: {}]
  %s4 = inlined_call_operand.vmem [shape: f32[1,100], index: 4, kind: input, shape index: {}]
  %s5 = inlined_call_operand.vmem [shape: bf16[100,120], index: 5, kind: input, shape index: {}]
  %s6 = inlined_call_operand.vmem [shape: f32[1,120], index: 6, kind: input, shape index: {}]
  %s7 = inlined_call_operand.vmem [shape: bf16[120,60], index: 7, kind: input, shape index: {}]
  %s8 = inlined_call_operand.vmem [shape: f32[1,60], index: 8, kind: input, shape index: {}]
  %s9 = inlined_call_operand.hbm [shape: bf16[60,128], index: 9, kind: input, shape index: {}]
  %s10 = inlined_call_operand.vmem [shape: f32[1,128], index: 10, kind: input, shape index: {}]
  %s11 = inlined_call_operand.hbm [shape: f32[8,128], index: 11, kind: output, shape index: {}]
  %s12 = sld [smem:[#allocation0]]
  $region70: #{tpu_custom_call.1} parent=0
    _
  %s14 = ssub.s32 1, %s12
  %s15 = scalar_select 0, %s14, %s12
  $region1: #{tpu_custom_call.1} parent=0
    #allocation2 [shape = 'u8[2048]{0}', space=vmem, size = 0x800, scoped, tag = 'input window, operand 0, single buffered']
    #allocation3 [shape = 's32[1]{0}', space=sflag, size = 0x4, scoped, tag = 'scoped memory for tpu_custom_call.1']
    #allocation4 [shape = 's32[1]{0}', space=sflag, size = 0x4, scoped, tag = 'scoped memory for tpu_custom_call.1']
    #allocation5 [shape = 'u8[1536]{0}', space=vmem, size = 0x800, scoped, tag = 'input window, operand 2, single buffered']
    #allocation6 [shape = 's32[1]{0}', space=sflag, size = 0x4, scoped, tag = 'scoped memory for tpu_custom_call.1']
    #allocation7 [shape = 'u8[77824]{0}', space=vmem, size = 0x13000, scoped, tag = 'input window, operand 3, single buffered']
    #allocation8 [shape = 'u8[16384]{0}', space=vmem, size = 0x4000, scoped, tag = 'input window, operand 9, single buffered']
    #allocation9 [shape = 's32[1]{0}', space=sflag, size = 0x4, scoped, tag = 'scoped memory for tpu_custom_call.1']
    #allocation10 [shape = 'u8[4096]{0}', space=vmem, size = 0x1000, scoped, tag = 'output window, operand 0, single buffered']
    %16 = vsyncpa [#allocation3], 0
    %17 = vsyncpa [#allocation6], 0
    %18 = vsyncpa [#allocation9], 0
    %19 = vsyncpa [#allocation4], 0
    // Predicated region
    $region2: #{tpu_custom_call.1} parent=1 // pred_check
      _
    $region3: #{tpu_custom_call.1} parent=1 // pred_check_branch
      %21 = sbr.rel (0) target = $region5
    $region4: #{tpu_custom_call.1} parent=1 // pred_region
      %s23 = ssub.s32 64, 64
      %24 = vsyncadd [#allocation3], %s23
      %s26 = sshll.u32 [#allocation2], 4
      %s27 = int_to_ptr.vmem [resolvable:$true] %s26
      %29 = dma.hbm_to_vmem [thread:$0]  %s0, 64, %s27, [#allocation3]
    $region5: #{tpu_custom_call.1} parent=1 // pred_fallthru
      _
    // Predicated region
    $region6: #{tpu_custom_call.1} parent=1 // pred_check
      _
    $region7: #{tpu_custom_call.1} parent=1 // pred_check_branch
      %31 = sbr.rel (0) target = $region9
    $region8: #{tpu_custom_call.1} parent=1 // pred_region
      _
    $region9: #{tpu_custom_call.1} parent=1 // pred_fallthru
      _
    // Predicated region
    $region10: #{tpu_custom_call.1} parent=1 // pred_check
      _
    $region11: #{tpu_custom_call.1} parent=1 // pred_check_branch
      %33 = sbr.rel (0) target = $region13
    $region12: #{tpu_custom_call.1} parent=1 // pred_region
      %s35 = ssub.s32 48, 48
      %36 = vsyncadd [#allocation6], %s35
      %s38 = sshll.u32 [#allocation5], 4
      %s39 = int_to_ptr.vmem [resolvable:$true] %s38
      %41 = dma.hbm_to_vmem [thread:$0]  %s2, 48, %s39, [#allocation6]
    $region13: #{tpu_custom_call.1} parent=1 // pred_fallthru
      _
    // Predicated region
    $region14: #{tpu_custom_call.1} parent=1 // pred_check
      _
    $region15: #{tpu_custom_call.1} parent=1 // pred_check_branch
      %43 = sbr.rel (0) target = $region17
    $region16: #{tpu_custom_call.1} parent=1 // pred_region
      %s45 = ssub.s32 2432, 2432
      %46 = vsyncadd [#allocation6], %s45
      %s47 = sshll.u32 [#allocation7], 4
      %s48 = int_to_ptr.vmem [resolvable:$true] %s47
      %53 = dma.hbm_to_vmem [thread:$0]  %s3, 2432, %s48, [#allocation6], 64, 64, 4
    $region17: #{tpu_custom_call.1} parent=1 // pred_fallthru
      _
    // Predicated region
    $region18: #{tpu_custom_call.1} parent=1 // pred_check
      _
    $region19: #{tpu_custom_call.1} parent=1 // pred_check_branch
      %55 = sbr.rel (0) target = $region21
    $region20: #{tpu_custom_call.1} parent=1 // pred_region
      _
    $region21: #{tpu_custom_call.1} parent=1 // pred_fallthru
      _
    // Predicated region
    $region22: #{tpu_custom_call.1} parent=1 // pred_check
      _
    $region23: #{tpu_custom_call.1} parent=1 // pred_check_branch
      %57 = sbr.rel (0) target = $region25
    $region24: #{tpu_custom_call.1} parent=1 // pred_region
      _
    $region25: #{tpu_custom_call.1} parent=1 // pred_fallthru
      _
    // Predicated region
    $region26: #{tpu_custom_call.1} parent=1 // pred_check
      _
    $region27: #{tpu_custom_call.1} parent=1 // pred_check_branch
      %59 = sbr.rel (0) target = $region29
    $region28: #{tpu_custom_call.1} parent=1 // pred_region
      _
    $region29: #{tpu_custom_call.1} parent=1 // pred_fallthru
      _
    // Predicated region
    $region30: #{tpu_custom_call.1} parent=1 // pred_check
      _
    $region31: #{tpu_custom_call.1} parent=1 // pred_check_branch
      %61 = sbr.rel (0) target = $region33
    $region32: #{tpu_custom_call.1} parent=1 // pred_region
      _
    $region33: #{tpu_custom_call.1} parent=1 // pred_fallthru
      _
    // Predicated region
    $region34: #{tpu_custom_call.1} parent=1 // pred_check
      _
    $region35: #{tpu_custom_call.1} parent=1 // pred_check_branch
      %63 = sbr.rel (0) target = $region37
    $region36: #{tpu_custom_call.1} parent=1 // pred_region
      _
    $region37: #{tpu_custom_call.1} parent=1 // pred_fallthru
      _
    // Predicated region
    $region38: #{tpu_custom_call.1} parent=1 // pred_check
      _
    $region39: #{tpu_custom_call.1} parent=1 // pred_check_branch
      %65 = sbr.rel (0) target = $region41
    $region40: #{tpu_custom_call.1} parent=1 // pred_region
      %s67 = ssub.s32 512, 512
      %68 = vsyncadd [#allocation9], %s67
      %s69 = sshll.u32 [#allocation8], 4
      %s70 = int_to_ptr.vmem [resolvable:$true] %s69
      %75 = dma.hbm_to_vmem [thread:$0]  %s9, 512, %s70, [#allocation9], 64, 64, 4
    $region41: #{tpu_custom_call.1} parent=1 // pred_fallthru
      _
    // Predicated region
    $region42: #{tpu_custom_call.1} parent=1 // pred_check
      _
    $region43: #{tpu_custom_call.1} parent=1 // pred_check_branch
      %77 = sbr.rel (0) target = $region45
    $region44: #{tpu_custom_call.1} parent=1 // pred_region
      _
    $region45: #{tpu_custom_call.1} parent=1 // pred_fallthru
      _
    // Predicated region
    $region46: #{tpu_custom_call.1} parent=1 // pred_check
      _
    $region47: #{tpu_custom_call.1} parent=1 // pred_check_branch
      %79 = sbr.rel (0) target = $region49
    $region48: #{tpu_custom_call.1} parent=1 // pred_region
      %80 = dma.done [#allocation3], 64
    $region49: #{tpu_custom_call.1} parent=1 // pred_fallthru
      _
    // Predicated region
    $region50: #{tpu_custom_call.1} parent=1 // pred_check
      _
    $region51: #{tpu_custom_call.1} parent=1 // pred_check_branch
      %82 = sbr.rel (0) target = $region53
    $region52: #{tpu_custom_call.1} parent=1 // pred_region
      %83 = dma.done [#allocation6], 48
    $region53: #{tpu_custom_call.1} parent=1 // pred_fallthru
      _
    // Predicated region
    $region54: #{tpu_custom_call.1} parent=1 // pred_check
      _
    $region55: #{tpu_custom_call.1} parent=1 // pred_check_branch
      %85 = sbr.rel (0) target = $region57
    $region56: #{tpu_custom_call.1} parent=1 // pred_region
      %86 = dma.done [#allocation6], 2432
    $region57: #{tpu_custom_call.1} parent=1 // pred_fallthru
      _
    // Predicated region
    $region58: #{tpu_custom_call.1} parent=1 // pred_check
      _
    $region59: #{tpu_custom_call.1} parent=1 // pred_check_branch
      %88 = sbr.rel (0) target = $region61
    $region60: #{tpu_custom_call.1} parent=1 // pred_region
      %89 = dma.done [#allocation9], 512
    $region61: #{tpu_custom_call.1} parent=1 // pred_fallthru
      _
    %v91 = vld [vmem:[#allocation2] sm:$0xf]
    %v92 = vld [vmem:[%s1] sm:$0xff]
    %v93 = vld [vmem:[%s1 + $0x8] sm:$0xf]
    %v94 = vld [vmem:[%s1 + $0xc] sm:$0xff]
    %v95 = vld [vmem:[%s1 + $0x14] sm:$0xf]
    %v96 = vld [vmem:[%s1 + $0x18] sm:$0xff]
    %v97 = vld [vmem:[%s1 + $0x20] sm:$0xf]
    %v98 = vld [vmem:[%s1 + $0x24] sm:$0xff]
    %v99 = vld [vmem:[%s1 + $0x2c] sm:$0xf]
    %v100 = vld [vmem:[#allocation5] sm:$0x7]
    %v102 = vlaneseq
    %v103 = vshrl.u32 %v102, 7
    %v104 = vsub.s32 0, %v103
    %v105 = vrot.slane %v100, %v104
    %v106 = vlaneseq
    %v107 = vshrl.u32 %v106, 7
    %v108 = vsub.s32 1, %v107
    %v109 = vrot.slane %v100, %v108
    %v110 = vlaneseq
    %v111 = vshrl.u32 %v110, 7
    %v112 = vsub.s32 2, %v111
    %v113 = vrot.slane %v100, %v112
    %v125 = vunpack.c.l.b16 %v92
    %v126 = vunpack.c.h.b16 %v92
    %v127 = vunpack.c.l.b16 %v93
    %v128 = vunpack.c.l.b16 %v94
    %v129 = vunpack.c.h.b16 %v94
    %v130 = vunpack.c.l.b16 %v95
    %v131 = vunpack.c.l.b16 %v96
    %v132 = vunpack.c.h.b16 %v96
    %v133 = vunpack.c.l.b16 %v97
    %v134 = vunpack.c.l.b16 %v98
    %v135 = vunpack.c.h.b16 %v98
    %v136 = vunpack.c.l.b16 %v99
    %v137 = vpack.c.b16 %v128, %v125
    %v138 = vpack.c.b16 %v129, %v126
    %v139 = vpack.c.b16 %v130, %v127
    %v140 = vpack.c.b16 %v134, %v131
    %v141 = vpack.c.b16 %v135, %v132
    %v142 = vpack.c.b16 %v136, %v133
    %vm149 = vcmask 261120
    %v151 = vsel %vm149, %v91, 0
    %153 = vmatprep.subr.bf16.mxu0 0
    %154 = vmatpush1.bf16.msra.mxu0 0
    %155 = vmatprep.subr.bf16.mxu0 0
    %156 = vmatpush1.bf16.msra.mxu0 0
    %157 = vmatprep.subr.bf16.mxu0 0
    %158 = vmatpush1.bf16.msra.mxu0 0
    %159 = vmatprep.subr.bf16.mxu0 0
    %160 = vmatpush1.bf16.msra.mxu0 0
    %161 = vmatprep.subr.bf16.mxu0 0
    %162 = vmatpush1.bf16.msra.mxu0 0
    %163 = vmatprep.subr.bf16.mxu0 0
    %164 = vmatpush1.bf16.msra.mxu0 0
    %165 = vmatprep.subr.bf16.mxu0 %v141
    %166 = vmatpush1.bf16.msra.mxu0 %v140
    %167 = vmatprep.subr.bf16.mxu0 %v138
    %168 = vmatpush1.bf16.msra.mxu0 %v137
    %169 = vmatprep.subr.bf16.mxu0 0
    %170 = vmatpush2.bf16.msra.mxu0 0
    %171 = vmatprep.subr.bf16.mxu0 0
    %172 = vmatpush2.bf16.msra.mxu0 0
    %173 = vmatprep.subr.bf16.mxu0 0
    %174 = vmatpush2.bf16.msra.mxu0 0
    %175 = vmatprep.subr.bf16.mxu0 0
    %176 = vmatpush2.bf16.msra.mxu0 0
    %177 = vmatprep.subr.bf16.mxu0 0
    %178 = vmatpush2.bf16.msra.mxu0 0
    %179 = vmatprep.subr.bf16.mxu0 0
    %180 = vmatpush2.bf16.msra.mxu0 0
    %181 = vmatprep.subr.bf16.mxu0 0
    %182 = vmatpush2.bf16.msra.mxu0 0
    %183 = vmatprep.subr.bf16.mxu0 0
    %184 = vmatpush2.bf16.msra.mxu0 0
    %185 = vmatprep.mubr.bf16.mxu0 0
    %186 = vmatmul.mubr.bf16.gmra.mxu0 %v151
    %v187 = vpop.f32.mrf.mxu0
    %v188 = vadd.f32 %v105, %v187
    %v189 = vpop.f32.mrf.mxu0
    %v190 = vadd.f32 %v109, %v189
    %v191 = vpop.f32.mrf.mxu0
    %v192 = vpop.f32.mrf.mxu0
    %193 = vdwg.mxu0
    %194 = vmatprep.subr.bf16.mxu0 0
    %195 = vmatpush1.bf16.msra.mxu0 0
    %196 = vmatprep.subr.bf16.mxu0 0
    %197 = vmatpush1.bf16.msra.mxu0 0
    %198 = vmatprep.subr.bf16.mxu0 0
    %199 = vmatpush1.bf16.msra.mxu0 0
    %200 = vmatprep.subr.bf16.mxu0 0
    %201 = vmatpush1.bf16.msra.mxu0 0
    %202 = vmatprep.subr.bf16.mxu0 0
    %203 = vmatpush1.bf16.msra.mxu0 0
    %204 = vmatprep.subr.bf16.mxu0 0
    %205 = vmatpush1.bf16.msra.mxu0 0
    %206 = vmatprep.subr.bf16.mxu0 0
    %207 = vmatpush1.bf16.msra.mxu0 %v142
    %208 = vmatprep.subr.bf16.mxu0 0
    %209 = vmatpush1.bf16.msra.mxu0 %v139
    %210 = vmatprep.subr.bf16.mxu0 0
    %211 = vmatpush2.bf16.msra.mxu0 0
    %212 = vmatprep.subr.bf16.mxu0 0
    %213 = vmatpush2.bf16.msra.mxu0 0
    %214 = vmatprep.subr.bf16.mxu0 0
    %215 = vmatpush2.bf16.msra.mxu0 0
    %216 = vmatprep.subr.bf16.mxu0 0
    %217 = vmatpush2.bf16.msra.mxu0 0
    %218 = vmatprep.subr.bf16.mxu0 0
    %219 = vmatpush2.bf16.msra.mxu0 0
    %220 = vmatprep.subr.bf16.mxu0 0
    %221 = vmatpush2.bf16.msra.mxu0 0
    %222 = vmatprep.subr.bf16.mxu0 0
    %223 = vmatpush2.bf16.msra.mxu0 0
    %224 = vmatprep.subr.bf16.mxu0 0
    %225 = vmatpush2.bf16.msra.mxu0 0
    %226 = vmatprep.mubr.bf16.mxu0 0
    %227 = vmatmul.mubr.bf16.gmra.mxu0 %v151
    %v228 = vpop.f32.mrf.mxu0
    %v229 = vadd.f32 %v113, %v228
    %v230 = vpop.f32.mrf.mxu0
    %v231 = vpop.f32.mrf.mxu0
    %v232 = vpop.f32.mrf.mxu0
    %233 = vdwg.mxu0
    %v234 = vmax.f32 %v188, 0.0
    %v235 = vmax.f32 %v190, 0.0
    %v236 = vmax.f32 %v229, 0.0
    %v237 = vpack.c.bf16 %v234, %v234
    %v238 = vpack.c.bf16 %v235, %v235
    %v239 = vpack.c.bf16 %v236, %v236
    %v240 = vld [vmem:[#allocation7] sm:$0xf]
    %v241 = vld [vmem:[#allocation7 + $0x4] sm:$0xf]
    %v242 = vld [vmem:[#allocation7 + $0x8] sm:$0xf]
    %v243 = vld [vmem:[#allocation7 + $0xc] sm:$0xf]
    %v244 = vld [vmem:[#allocation7 + $0x10] sm:$0xf]
    %v245 = vld [vmem:[#allocation7 + $0x14] sm:$0xf]
    %v246 = vld [vmem:[#allocation7 + $0x18] sm:$0xf]
    %v247 = vld [vmem:[#allocation7 + $0x1c] sm:$0xf]
    %v248 = vld [vmem:[#allocation7 + $0x20] sm:$0xf]
    %v249 = vld [vmem:[#allocation7 + $0x24] sm:$0xf]
    %v250 = vld [vmem:[#allocation7 + $0x28] sm:$0xf]
    %v251 = vld [vmem:[#allocation7 + $0x2c] sm:$0xf]
    %v252 = vld [vmem:[#allocation7 + $0x30] sm:$0xf]
    %v253 = vld [vmem:[#allocation7 + $0x34] sm:$0xf]
    %v254 = vld [vmem:[#allocation7 + $0x38] sm:$0xf]
    %v255 = vld [vmem:[#allocation7 + $0x3c] sm:$0xf]
    %v256 = vld [vmem:[#allocation7 + $0x40] sm:$0xf]
    %v257 = vld [vmem:[#allocation7 + $0x44] sm:$0xf]
    %v258 = vld [vmem:[#allocation7 + $0x48] sm:$0xf]
    %v259 = vld [vmem:[#allocation7 + $0x4c] sm:$0xf]
    %v260 = vld [vmem:[#allocation7 + $0x50] sm:$0xf]
    %v261 = vld [vmem:[#allocation7 + $0x54] sm:$0xf]
    %v262 = vld [vmem:[#allocation7 + $0x58] sm:$0xf]
    %v263 = vld [vmem:[#allocation7 + $0x5c] sm:$0xf]
    %v264 = vld [vmem:[#allocation7 + $0x60] sm:$0xf]
    %v265 = vld [vmem:[#allocation7 + $0x64] sm:$0xf]
    %v266 = vld [vmem:[#allocation7 + $0x68] sm:$0xf]
    %v267 = vld [vmem:[#allocation7 + $0x6c] sm:$0xf]
    %v268 = vld [vmem:[#allocation7 + $0x70] sm:$0xf]
    %v269 = vld [vmem:[#allocation7 + $0x74] sm:$0xf]
    %v270 = vld [vmem:[#allocation7 + $0x78] sm:$0xf]
    %v271 = vld [vmem:[#allocation7 + $0x7c] sm:$0xf]
    %v272 = vld [vmem:[#allocation7 + $0x80] sm:$0xf]
    %v273 = vld [vmem:[#allocation7 + $0x84] sm:$0xf]
    %v274 = vld [vmem:[#allocation7 + $0x88] sm:$0xf]
    %v275 = vld [vmem:[#allocation7 + $0x8c] sm:$0xf]
    %v276 = vld [vmem:[#allocation7 + $0x90] sm:$0xf]
    %v277 = vld [vmem:[#allocation7 + $0x94] sm:$0x3]
    %v278 = vld [vmem:[%s4] sm:$0x1]
    %v280 = vlaneseq
    %v281 = vshrl.u32 %v280, 7
    %v282 = vsub.s32 0, %v281
    %v283 = vrot.slane %v278, %v282
    %v323 = vunpack.c.l.b16 %v240
    %v324 = vunpack.c.l.b16 %v241
    %v325 = vunpack.c.l.b16 %v242
    %v326 = vunpack.c.l.b16 %v243
    %v327 = vunpack.c.l.b16 %v244
    %v328 = vunpack.c.l.b16 %v245
    %v329 = vunpack.c.l.b16 %v246
    %v330 = vunpack.c.l.b16 %v247
    %v331 = vunpack.c.l.b16 %v248
    %v332 = vunpack.c.l.b16 %v249
    %v333 = vunpack.c.l.b16 %v250
    %v334 = vunpack.c.l.b16 %v251
    %v335 = vunpack.c.l.b16 %v252
    %v336 = vunpack.c.l.b16 %v253
    %v337 = vunpack.c.l.b16 %v254
    %v338 = vunpack.c.l.b16 %v255
    %v339 = vunpack.c.l.b16 %v256
    %v340 = vunpack.c.l.b16 %v257
    %v341 = vunpack.c.l.b16 %v258
    %v342 = vunpack.c.l.b16 %v259
    %v343 = vunpack.c.l.b16 %v260
    %v344 = vunpack.c.l.b16 %v261
    %v345 = vunpack.c.l.b16 %v262
    %v346 = vunpack.c.l.b16 %v263
    %v347 = vunpack.c.l.b16 %v264
    %v348 = vunpack.c.l.b16 %v265
    %v349 = vunpack.c.l.b16 %v266
    %v350 = vunpack.c.l.b16 %v267
    %v351 = vunpack.c.l.b16 %v268
    %v352 = vunpack.c.l.b16 %v269
    %v353 = vunpack.c.l.b16 %v270
    %v354 = vunpack.c.l.b16 %v271
    %v355 = vunpack.c.l.b16 %v272
    %v356 = vunpack.c.l.b16 %v273
    %v357 = vunpack.c.l.b16 %v274
    %v358 = vunpack.c.l.b16 %v275
    %v359 = vunpack.c.l.b16 %v276
    %v360 = vunpack.c.l.b16 %v277
    %v361 = vpack.c.b16 %v324, %v323
    %v362 = vpack.c.b16 %v326, %v325
    %v363 = vpack.c.b16 %v328, %v327
    %v364 = vpack.c.b16 %v330, %v329
    %v365 = vpack.c.b16 %v332, %v331
    %v366 = vpack.c.b16 %v334, %v333
    %v367 = vpack.c.b16 %v336, %v335
    %v368 = vpack.c.b16 %v338, %v337
    %v369 = vpack.c.b16 %v340, %v339
    %v370 = vpack.c.b16 %v342, %v341
    %v371 = vpack.c.b16 %v344, %v343
    %v372 = vpack.c.b16 %v346, %v345
    %v373 = vpack.c.b16 %v348, %v347
    %v374 = vpack.c.b16 %v350, %v349
    %v375 = vpack.c.b16 %v352, %v351
    %v376 = vpack.c.b16 %v354, %v353
    %v377 = vpack.c.b16 %v356, %v355
    %v378 = vpack.c.b16 %v358, %v357
    %v379 = vpack.c.b16 %v360, %v359
    %vm398 = vcmask 359424
    %v400 = vsel %vm398, %v239, 0
    %vm402 = vcmask 1045504
    %v404 = vsel %vm402, %v379, 0
    %406 = vmatprep.subr.bf16.mxu0 0
    %407 = vmatpush1.bf16.msra.mxu0 %v368
    %408 = vmatprep.subr.bf16.mxu0 0
    %409 = vmatpush1.bf16.msra.mxu0 %v367
    %410 = vmatprep.subr.bf16.mxu0 0
    %411 = vmatpush1.bf16.msra.mxu0 %v366
    %412 = vmatprep.subr.bf16.mxu0 0
    %413 = vmatpush1.bf16.msra.mxu0 %v365
    %414 = vmatprep.subr.bf16.mxu0 0
    %415 = vmatpush1.bf16.msra.mxu0 %v364
    %416 = vmatprep.subr.bf16.mxu0 0
    %417 = vmatpush1.bf16.msra.mxu0 %v363
    %418 = vmatprep.subr.bf16.mxu0 0
    %419 = vmatpush1.bf16.msra.mxu0 %v362
    %420 = vmatprep.subr.bf16.mxu0 0
    %421 = vmatpush1.bf16.msra.mxu0 %v361
    %422 = vmatprep.subr.bf16.mxu0 0
    %423 = vmatpush2.bf16.msra.mxu0 %v376
    %424 = vmatprep.subr.bf16.mxu0 0
    %425 = vmatpush2.bf16.msra.mxu0 %v375
    %426 = vmatprep.subr.bf16.mxu0 0
    %427 = vmatpush2.bf16.msra.mxu0 %v374
    %428 = vmatprep.subr.bf16.mxu0 0
    %429 = vmatpush2.bf16.msra.mxu0 %v373
    %430 = vmatprep.subr.bf16.mxu0 0
    %431 = vmatpush2.bf16.msra.mxu0 %v372
    %432 = vmatprep.subr.bf16.mxu0 0
    %433 = vmatpush2.bf16.msra.mxu0 %v371
    %434 = vmatprep.subr.bf16.mxu0 0
    %435 = vmatpush2.bf16.msra.mxu0 %v370
    %436 = vmatprep.subr.bf16.mxu0 0
    %437 = vmatpush2.bf16.msra.mxu0 %v369
    %438 = vmatprep.mubr.bf16.mxu0 %v238
    %439 = vmatmul.mubr.bf16.gmra.mxu0 %v237
    %v440 = vpop.f32.mrf.mxu0
    %v441 = vadd.f32 %v283, %v440
    %v442 = vpop.f32.mrf.mxu0
    %v443 = vpop.f32.mrf.mxu0
    %v444 = vpop.f32.mrf.mxu0
    %445 = vdwg.mxu0
    %446 = vmatprep.subr.bf16.mxu0 0
    %447 = vmatpush1.bf16.msra.mxu0 0
    %448 = vmatprep.subr.bf16.mxu0 0
    %449 = vmatpush1.bf16.msra.mxu0 0
    %450 = vmatprep.subr.bf16.mxu0 0
    %451 = vmatpush1.bf16.msra.mxu0 0
    %452 = vmatprep.subr.bf16.mxu0 0
    %453 = vmatpush1.bf16.msra.mxu0 0
    %454 = vmatprep.subr.bf16.mxu0 0
    %455 = vmatpush1.bf16.msra.mxu0 0
    %456 = vmatprep.subr.bf16.mxu0 0
    %457 = vmatpush1.bf16.msra.mxu0 %v404
    %458 = vmatprep.subr.bf16.mxu0 0
    %459 = vmatpush1.bf16.msra.mxu0 %v378
    %460 = vmatprep.subr.bf16.mxu0 0
    %461 = vmatpush1.bf16.msra.mxu0 %v377
    %462 = vmatprep.subr.bf16.mxu0 0
    %463 = vmatpush2.bf16.msra.mxu0 0
    %464 = vmatprep.subr.bf16.mxu0 0
    %465 = vmatpush2.bf16.msra.mxu0 0
    %466 = vmatprep.subr.bf16.mxu0 0
    %467 = vmatpush2.bf16.msra.mxu0 0
    %468 = vmatprep.subr.bf16.mxu0 0
    %469 = vmatpush2.bf16.msra.mxu0 0
    %470 = vmatprep.subr.bf16.mxu0 0
    %471 = vmatpush2.bf16.msra.mxu0 0
    %472 = vmatprep.subr.bf16.mxu0 0
    %473 = vmatpush2.bf16.msra.mxu0 0
    %474 = vmatprep.subr.bf16.mxu0 0
    %475 = vmatpush2.bf16.msra.mxu0 0
    %476 = vmatprep.subr.bf16.mxu0 0
    %477 = vmatpush2.bf16.msra.mxu0 0
    %478 = vmatprep.mubr.bf16.mxu0 0
    %479 = vmatmul.mubr.bf16.gmra.mxu0 %v400
    %v480 = vpop.f32.mrf.mxu0
    %v481 = vadd.f32 %v441, %v480
    %v482 = vpop.f32.mrf.mxu0
    %v483 = vpop.f32.mrf.mxu0
    %v484 = vpop.f32.mrf.mxu0
    %485 = vdwg.mxu0
    %v486 = vmax.f32 %v481, 0.0
    %v487 = vpack.c.bf16 %v486, %v486
    %v488 = vld [vmem:[%s5] sm:$0xf]
    %v489 = vld [vmem:[%s5 + $0x4] sm:$0xf]
    %v490 = vld [vmem:[%s5 + $0x8] sm:$0xf]
    %v491 = vld [vmem:[%s5 + $0xc] sm:$0xf]
    %v492 = vld [vmem:[%s5 + $0x10] sm:$0xf]
    %v493 = vld [vmem:[%s5 + $0x14] sm:$0xf]
    %v494 = vld [vmem:[%s5 + $0x18] sm:$0xf]
    %v495 = vld [vmem:[%s5 + $0x1c] sm:$0xf]
    %v496 = vld [vmem:[%s5 + $0x20] sm:$0xf]
    %v497 = vld [vmem:[%s5 + $0x24] sm:$0xf]
    %v498 = vld [vmem:[%s5 + $0x28] sm:$0xf]
    %v499 = vld [vmem:[%s5 + $0x2c] sm:$0xf]
    %v500 = vld [vmem:[%s5 + $0x30] sm:$0x3]
    %v501 = vld [vmem:[%s6] sm:$0x1]
    %v503 = vlaneseq
    %v504 = vshrl.u32 %v503, 7
    %v505 = vsub.s32 0, %v504
    %v506 = vrot.slane %v501, %v505
    %v521 = vunpack.c.l.b16 %v488
    %v522 = vunpack.c.l.b16 %v489
    %v523 = vunpack.c.l.b16 %v490
    %v524 = vunpack.c.l.b16 %v491
    %v525 = vunpack.c.l.b16 %v492
    %v526 = vunpack.c.l.b16 %v493
    %v527 = vunpack.c.l.b16 %v494
    %v528 = vunpack.c.l.b16 %v495
    %v529 = vunpack.c.l.b16 %v496
    %v530 = vunpack.c.l.b16 %v497
    %v531 = vunpack.c.l.b16 %v498
    %v532 = vunpack.c.l.b16 %v499
    %v533 = vunpack.c.l.b16 %v500
    %v534 = vpack.c.b16 %v522, %v521
    %v535 = vpack.c.b16 %v524, %v523
    %v536 = vpack.c.b16 %v526, %v525
    %v537 = vpack.c.b16 %v528, %v527
    %v538 = vpack.c.b16 %v530, %v529
    %v539 = vpack.c.b16 %v532, %v531
    %v540 = vpack.c.b16 %v533, %v533
    %vm547 = vcmask 818176
    %v549 = vsel %vm547, %v487, 0
    %vm551 = vcmask 1041408
    %v553 = vsel %vm551, %v540, 0
    %555 = vmatprep.subr.bf16.mxu0 0
    %556 = vmatpush1.bf16.msra.mxu0 0
    %557 = vmatprep.subr.bf16.mxu0 0
    %558 = vmatpush1.bf16.msra.mxu0 %v553
    %559 = vmatprep.subr.bf16.mxu0 0
    %560 = vmatpush1.bf16.msra.mxu0 %v539
    %561 = vmatprep.subr.bf16.mxu0 0
    %562 = vmatpush1.bf16.msra.mxu0 %v538
    %563 = vmatprep.subr.bf16.mxu0 0
    %564 = vmatpush1.bf16.msra.mxu0 %v537
    %565 = vmatprep.subr.bf16.mxu0 0
    %566 = vmatpush1.bf16.msra.mxu0 %v536
    %567 = vmatprep.subr.bf16.mxu0 0
    %568 = vmatpush1.bf16.msra.mxu0 %v535
    %569 = vmatprep.subr.bf16.mxu0 0
    %570 = vmatpush1.bf16.msra.mxu0 %v534
    %571 = vmatprep.subr.bf16.mxu0 0
    %572 = vmatpush2.bf16.msra.mxu0 0
    %573 = vmatprep.subr.bf16.mxu0 0
    %574 = vmatpush2.bf16.msra.mxu0 0
    %575 = vmatprep.subr.bf16.mxu0 0
    %576 = vmatpush2.bf16.msra.mxu0 0
    %577 = vmatprep.subr.bf16.mxu0 0
    %578 = vmatpush2.bf16.msra.mxu0 0
    %579 = vmatprep.subr.bf16.mxu0 0
    %580 = vmatpush2.bf16.msra.mxu0 0
    %581 = vmatprep.subr.bf16.mxu0 0
    %582 = vmatpush2.bf16.msra.mxu0 0
    %583 = vmatprep.subr.bf16.mxu0 0
    %584 = vmatpush2.bf16.msra.mxu0 0
    %585 = vmatprep.subr.bf16.mxu0 0
    %586 = vmatpush2.bf16.msra.mxu0 0
    %587 = vmatprep.mubr.bf16.mxu0 0
    %588 = vmatmul.mubr.bf16.gmra.mxu0 %v549
    %v589 = vpop.f32.mrf.mxu0
    %v590 = vadd.f32 %v506, %v589
    %v591 = vpop.f32.mrf.mxu0
    %v592 = vpop.f32.mrf.mxu0
    %v593 = vpop.f32.mrf.mxu0
    %594 = vdwg.mxu0
    %v595 = vmax.f32 %v590, 0.0
    %v596 = vpack.c.bf16 %v595, %v595
    %v597 = vld [vmem:[%s7] sm:$0xf]
    %v598 = vld [vmem:[%s7 + $0x4] sm:$0xf]
    %v599 = vld [vmem:[%s7 + $0x8] sm:$0xf]
    %v600 = vld [vmem:[%s7 + $0xc] sm:$0xf]
    %v601 = vld [vmem:[%s7 + $0x10] sm:$0xf]
    %v602 = vld [vmem:[%s7 + $0x14] sm:$0xf]
    %v603 = vld [vmem:[%s7 + $0x18] sm:$0xf]
    %v604 = vld [vmem:[%s7 + $0x1c] sm:$0xf]
    %v605 = vld [vmem:[%s7 + $0x20] sm:$0xf]
    %v606 = vld [vmem:[%s7 + $0x24] sm:$0xf]
    %v607 = vld [vmem:[%s7 + $0x28] sm:$0xf]
    %v608 = vld [vmem:[%s7 + $0x2c] sm:$0xf]
    %v609 = vld [vmem:[%s7 + $0x30] sm:$0xf]
    %v610 = vld [vmem:[%s7 + $0x34] sm:$0xf]
    %v611 = vld [vmem:[%s7 + $0x38] sm:$0xf]
    %v612 = vld [vmem:[%s8] sm:$0x1]
    %v614 = vlaneseq
    %v615 = vshrl.u32 %v614, 7
    %v616 = vsub.s32 0, %v615
    %v617 = vrot.slane %v612, %v616
    %v634 = vunpack.c.l.b16 %v597
    %v635 = vunpack.c.l.b16 %v598
    %v636 = vunpack.c.l.b16 %v599
    %v637 = vunpack.c.l.b16 %v600
    %v638 = vunpack.c.l.b16 %v601
    %v639 = vunpack.c.l.b16 %v602
    %v640 = vunpack.c.l.b16 %v603
    %v641 = vunpack.c.l.b16 %v604
    %v642 = vunpack.c.l.b16 %v605
    %v643 = vunpack.c.l.b16 %v606
    %v644 = vunpack.c.l.b16 %v607
    %v645 = vunpack.c.l.b16 %v608
    %v646 = vunpack.c.l.b16 %v609
    %v647 = vunpack.c.l.b16 %v610
    %v648 = vunpack.c.l.b16 %v611
    %v649 = vpack.c.b16 %v635, %v634
    %v650 = vpack.c.b16 %v637, %v636
    %v651 = vpack.c.b16 %v639, %v638
    %v652 = vpack.c.b16 %v641, %v640
    %v653 = vpack.c.b16 %v643, %v642
    %v654 = vpack.c.b16 %v645, %v644
    %v655 = vpack.c.b16 %v647, %v646
    %v656 = vpack.c.b16 %v648, %v648
    %vm664 = vcmask 982016
    %v666 = vsel %vm664, %v596, 0
    %vm668 = vcmask 1043456
    %v670 = vsel %vm668, %v656, 0
    %672 = vmatprep.subr.bf16.mxu0 0
    %673 = vmatpush1.bf16.msra.mxu0 %v670
    %674 = vmatprep.subr.bf16.mxu0 0
    %675 = vmatpush1.bf16.msra.mxu0 %v655
    %676 = vmatprep.subr.bf16.mxu0 0
    %677 = vmatpush1.bf16.msra.mxu0 %v654
    %678 = vmatprep.subr.bf16.mxu0 0
    %679 = vmatpush1.bf16.msra.mxu0 %v653
    %680 = vmatprep.subr.bf16.mxu0 0
    %681 = vmatpush1.bf16.msra.mxu0 %v652
    %682 = vmatprep.subr.bf16.mxu0 0
    %683 = vmatpush1.bf16.msra.mxu0 %v651
    %684 = vmatprep.subr.bf16.mxu0 0
    %685 = vmatpush1.bf16.msra.mxu0 %v650
    %686 = vmatprep.subr.bf16.mxu0 0
    %687 = vmatpush1.bf16.msra.mxu0 %v649
    %688 = vmatprep.subr.bf16.mxu0 0
    %689 = vmatpush2.bf16.msra.mxu0 0
    %690 = vmatprep.subr.bf16.mxu0 0
    %691 = vmatpush2.bf16.msra.mxu0 0
    %692 = vmatprep.subr.bf16.mxu0 0
    %693 = vmatpush2.bf16.msra.mxu0 0
    %694 = vmatprep.subr.bf16.mxu0 0
    %695 = vmatpush2.bf16.msra.mxu0 0
    %696 = vmatprep.subr.bf16.mxu0 0
    %697 = vmatpush2.bf16.msra.mxu0 0
    %698 = vmatprep.subr.bf16.mxu0 0
    %699 = vmatpush2.bf16.msra.mxu0 0
    %700 = vmatprep.subr.bf16.mxu0 0
    %701 = vmatpush2.bf16.msra.mxu0 0
    %702 = vmatprep.subr.bf16.mxu0 0
    %703 = vmatpush2.bf16.msra.mxu0 0
    %704 = vmatprep.mubr.bf16.mxu0 0
    %705 = vmatmul.mubr.bf16.gmra.mxu0 %v666
    %v706 = vpop.f32.mrf.mxu0
    %v707 = vadd.f32 %v617, %v706
    %v708 = vpop.f32.mrf.mxu0
    %v709 = vpop.f32.mrf.mxu0
    %v710 = vpop.f32.mrf.mxu0
    %711 = vdwg.mxu0
    %v712 = vmax.f32 %v707, 0.0
    %v713 = vpack.c.bf16 %v712, %v712
    %v714 = vld [vmem:[#allocation8] sm:$0xf]
    %v715 = vld [vmem:[#allocation8 + $0x4] sm:$0xf]
    %v716 = vld [vmem:[#allocation8 + $0x8] sm:$0xf]
    %v717 = vld [vmem:[#allocation8 + $0xc] sm:$0xf]
    %v718 = vld [vmem:[#allocation8 + $0x10] sm:$0xf]
    %v719 = vld [vmem:[#allocation8 + $0x14] sm:$0xf]
    %v720 = vld [vmem:[#allocation8 + $0x18] sm:$0xf]
    %v721 = vld [vmem:[#allocation8 + $0x1c] sm:$0x3]
    %v722 = vld [vmem:[%s10] sm:$0x1]
    %v724 = vlaneseq
    %v725 = vshrl.u32 %v724, 7
    %v726 = vsub.s32 0, %v725
    %v727 = vrot.slane %v722, %v726
    %v737 = vunpack.c.l.b16 %v714
    %v738 = vunpack.c.l.b16 %v715
    %v739 = vunpack.c.l.b16 %v716
    %v740 = vunpack.c.l.b16 %v717
    %v741 = vunpack.c.l.b16 %v718
    %v742 = vunpack.c.l.b16 %v719
    %v743 = vunpack.c.l.b16 %v720
    %v744 = vunpack.c.l.b16 %v721
    %v745 = vpack.c.b16 %v738, %v737
    %v746 = vpack.c.b16 %v740, %v739
    %v747 = vpack.c.b16 %v742, %v741
    %v748 = vpack.c.b16 %v744, %v743
    %vm752 = vcmask 490496
    %v754 = vsel %vm752, %v713, 0
    %v757 = vsel %vm402, %v748, 0
    %759 = vmatprep.subr.bf16.mxu0 0
    %760 = vmatpush1.bf16.msra.mxu0 0
    %761 = vmatprep.subr.bf16.mxu0 0
    %762 = vmatpush1.bf16.msra.mxu0 0
    %763 = vmatprep.subr.bf16.mxu0 0
    %764 = vmatpush1.bf16.msra.mxu0 0
    %765 = vmatprep.subr.bf16.mxu0 0
    %766 = vmatpush1.bf16.msra.mxu0 0
    %767 = vmatprep.subr.bf16.mxu0 0
    %768 = vmatpush1.bf16.msra.mxu0 %v757
    %769 = vmatprep.subr.bf16.mxu0 0
    %770 = vmatpush1.bf16.msra.mxu0 %v747
    %771 = vmatprep.subr.bf16.mxu0 0
    %772 = vmatpush1.bf16.msra.mxu0 %v746
    %773 = vmatprep.subr.bf16.mxu0 0
    %774 = vmatpush1.bf16.msra.mxu0 %v745
    %775 = vmatprep.subr.bf16.mxu0 0
    %776 = vmatpush2.bf16.msra.mxu0 0
    %777 = vmatprep.subr.bf16.mxu0 0
    %778 = vmatpush2.bf16.msra.mxu0 0
    %779 = vmatprep.subr.bf16.mxu0 0
    %780 = vmatpush2.bf16.msra.mxu0 0
    %781 = vmatprep.subr.bf16.mxu0 0
    %782 = vmatpush2.bf16.msra.mxu0 0
    %783 = vmatprep.subr.bf16.mxu0 0
    %784 = vmatpush2.bf16.msra.mxu0 0
    %785 = vmatprep.subr.bf16.mxu0 0
    %786 = vmatpush2.bf16.msra.mxu0 0
    %787 = vmatprep.subr.bf16.mxu0 0
    %788 = vmatpush2.bf16.msra.mxu0 0
    %789 = vmatprep.subr.bf16.mxu0 0
    %790 = vmatpush2.bf16.msra.mxu0 0
    %791 = vmatprep.mubr.bf16.mxu0 0
    %792 = vmatmul.mubr.bf16.gmra.mxu0 %v754
    %v793 = vpop.f32.mrf.mxu0
    %v794 = vadd.f32 %v727, %v793
    %v795 = vpop.f32.mrf.mxu0
    %v796 = vpop.f32.mrf.mxu0
    %v797 = vpop.f32.mrf.mxu0
    %798 = vdwg.mxu0
    %799 = vst [vmem:[#allocation10] sm:$0xff] %v794
    // Predicated region
    $region62: #{tpu_custom_call.1} parent=1 // pred_check
      _
    $region63: #{tpu_custom_call.1} parent=1 // pred_check_branch
      %801 = sbr.rel (0) target = $region65
    $region64: #{tpu_custom_call.1} parent=1 // pred_region
      %s803 = ssub.s32 128, 128
      %804 = vsyncadd [#allocation4], %s803
      %s806 = sshll.u32 [#allocation10], 4
      %s807 = int_to_ptr.vmem [resolvable:$true] %s806
      %809 = dma.vmem_to_hbm [thread:$0]  %s807, 128, %s11, [#allocation4]
    $region65: #{tpu_custom_call.1} parent=1 // pred_fallthru
      _
    // Predicated region
    $region66: #{tpu_custom_call.1} parent=1 // pred_check
      _
    $region67: #{tpu_custom_call.1} parent=1 // pred_check_branch
      %811 = sbr.rel (0) target = $region69
    $region68: #{tpu_custom_call.1} parent=1 // pred_region
      %812 = dma.done [#allocation4], 128
    $region69: #{tpu_custom_call.1} parent=1 // pred_fallthru
      _
    %813 = vsyncpa [#allocation3], 1
    %814 = vsyncpa [#allocation6], 1
    %815 = vsyncpa [#allocation9], 1
    %816 = vsyncpa [#allocation4], 1

// kernel: tpu_custom_call.1
$region0: #{tpu_custom_call.1}
  #allocation0 [shape = 'u32[]', space=smem, size = 0x4, offset = 0x4, fixed_abs, tag = 'smem constant byte address 0x4 - core index']
  #allocation1 [shape = 'u32[144,128]{1,0:T(1,128)}', space=vmem, size = 0x12000, scoped, tag = 'internal scratch']
  %s0 = inlined_call_operand.hbm [shape: bf16[8,32], index: 0, kind: input, shape index: {}]
  %s1 = inlined_call_operand.vmem [shape: bf16[32,300], index: 1, kind: input, shape index: {}]
  %s2 = inlined_call_operand.hbm [shape: f32[1,300], index: 2, kind: input, shape index: {}]
  %s3 = inlined_call_operand.hbm [shape: bf16[300,100], index: 3, kind: input, shape index: {}]
  %s4 = inlined_call_operand.vmem [shape: f32[1,100], index: 4, kind: input, shape index: {}]
  %s5 = inlined_call_operand.vmem [shape: bf16[100,120], index: 5, kind: input, shape index: {}]
  %s6 = inlined_call_operand.vmem [shape: f32[1,120], index: 6, kind: input, shape index: {}]
  %s7 = inlined_call_operand.vmem [shape: bf16[120,60], index: 7, kind: input, shape index: {}]
  %s8 = inlined_call_operand.vmem [shape: f32[1,60], index: 8, kind: input, shape index: {}]
  %s9 = inlined_call_operand.hbm [shape: bf16[60,128], index: 9, kind: input, shape index: {}]
  %s10 = inlined_call_operand.vmem [shape: f32[1,128], index: 10, kind: input, shape index: {}]
  %s11 = inlined_call_operand.hbm [shape: f32[8,128], index: 11, kind: output, shape index: {}]
  %s12 = sld [smem:[#allocation0]]
  $region70: #{tpu_custom_call.1} parent=0
    _
  %s14 = ssub.s32 1, %s12
  %s15 = scalar_select 0, %s14, %s12
  $region1: #{tpu_custom_call.1} parent=0
    #allocation2 [shape = 'u8[2048]{0}', space=vmem, size = 0x800, scoped, tag = 'input window, operand 0, single buffered']
    #allocation3 [shape = 's32[1]{0}', space=sflag, size = 0x4, scoped, tag = 'scoped memory for tpu_custom_call.1']
    #allocation4 [shape = 's32[1]{0}', space=sflag, size = 0x4, scoped, tag = 'scoped memory for tpu_custom_call.1']
    #allocation5 [shape = 'u8[1536]{0}', space=vmem, size = 0x800, scoped, tag = 'input window, operand 2, single buffered']
    #allocation6 [shape = 's32[1]{0}', space=sflag, size = 0x4, scoped, tag = 'scoped memory for tpu_custom_call.1']
    #allocation7 [shape = 'u8[77824]{0}', space=vmem, size = 0x13000, scoped, tag = 'input window, operand 3, single buffered']
    #allocation8 [shape = 'u8[16384]{0}', space=vmem, size = 0x4000, scoped, tag = 'input window, operand 9, single buffered']
    #allocation9 [shape = 's32[1]{0}', space=sflag, size = 0x4, scoped, tag = 'scoped memory for tpu_custom_call.1']
    #allocation10 [shape = 'u8[4096]{0}', space=vmem, size = 0x1000, scoped, tag = 'output window, operand 0, single buffered']
    %16 = vsyncpa [#allocation3], 0
    %17 = vsyncpa [#allocation6], 0
    %18 = vsyncpa [#allocation9], 0
    %19 = vsyncpa [#allocation4], 0
    // Predicated region
    $region2: #{tpu_custom_call.1} parent=1 // pred_check
      _
    $region3: #{tpu_custom_call.1} parent=1 // pred_check_branch
      %21 = sbr.rel (0) target = $region5
    $region4: #{tpu_custom_call.1} parent=1 // pred_region
      %s23 = ssub.s32 64, 64
      %24 = vsyncadd [#allocation3], %s23
      %s26 = sshll.u32 [#allocation2], 4
      %s27 = int_to_ptr.vmem [resolvable:$true] %s26
      %29 = dma.hbm_to_vmem [thread:$0]  %s0, 64, %s27, [#allocation3]
    $region5: #{tpu_custom_call.1} parent=1 // pred_fallthru
      _
    // Predicated region
    $region6: #{tpu_custom_call.1} parent=1 // pred_check
      _
    $region7: #{tpu_custom_call.1} parent=1 // pred_check_branch
      %31 = sbr.rel (0) target = $region9
    $region8: #{tpu_custom_call.1} parent=1 // pred_region
      _
    $region9: #{tpu_custom_call.1} parent=1 // pred_fallthru
      _
    // Predicated region
    $region10: #{tpu_custom_call.1} parent=1 // pred_check
      _
    $region11: #{tpu_custom_call.1} parent=1 // pred_check_branch
      %33 = sbr.rel (0) target = $region13
    $region12: #{tpu_custom_call.1} parent=1 // pred_region
      %s35 = ssub.s32 48, 48
      %36 = vsyncadd [#allocation6], %s35
      %s38 = sshll.u32 [#allocation5], 4
      %s39 = int_to_ptr.vmem [resolvable:$true] %s38
      %41 = dma.hbm_to_vmem [thread:$0]  %s2, 48, %s39, [#allocation6]
    $region13: #{tpu_custom_call.1} parent=1 // pred_fallthru
      _
    // Predicated region
    $region14: #{tpu_custom_call.1} parent=1 // pred_check
      _
    $region15: #{tpu_custom_call.1} parent=1 // pred_check_branch
      %43 = sbr.rel (0) target = $region17
    $region16: #{tpu_custom_call.1} parent=1 // pred_region
      %s45 = ssub.s32 2432, 2432
      %46 = vsyncadd [#allocation6], %s45
      %s47 = sshll.u32 [#allocation7], 4
      %s48 = int_to_ptr.vmem [resolvable:$true] %s47
      %53 = dma.hbm_to_vmem [thread:$0]  %s3, 2432, %s48, [#allocation6], 64, 64, 4
    $region17: #{tpu_custom_call.1} parent=1 // pred_fallthru
      _
    // Predicated region
    $region18: #{tpu_custom_call.1} parent=1 // pred_check
      _
    $region19: #{tpu_custom_call.1} parent=1 // pred_check_branch
      %55 = sbr.rel (0) target = $region21
    $region20: #{tpu_custom_call.1} parent=1 // pred_region
      _
    $region21: #{tpu_custom_call.1} parent=1 // pred_fallthru
      _
    // Predicated region
    $region22: #{tpu_custom_call.1} parent=1 // pred_check
      _
    $region23: #{tpu_custom_call.1} parent=1 // pred_check_branch
      %57 = sbr.rel (0) target = $region25
    $region24: #{tpu_custom_call.1} parent=1 // pred_region
      _
    $region25: #{tpu_custom_call.1} parent=1 // pred_fallthru
      _
    // Predicated region
    $region26: #{tpu_custom_call.1} parent=1 // pred_check
      _
    $region27: #{tpu_custom_call.1} parent=1 // pred_check_branch
      %59 = sbr.rel (0) target = $region29
    $region28: #{tpu_custom_call.1} parent=1 // pred_region
      _
    $region29: #{tpu_custom_call.1} parent=1 // pred_fallthru
      _
    // Predicated region
    $region30: #{tpu_custom_call.1} parent=1 // pred_check
      _
    $region31: #{tpu_custom_call.1} parent=1 // pred_check_branch
      %61 = sbr.rel (0) target = $region33
    $region32: #{tpu_custom_call.1} parent=1 // pred_region
      _
    $region33: #{tpu_custom_call.1} parent=1 // pred_fallthru
      _
    // Predicated region
    $region34: #{tpu_custom_call.1} parent=1 // pred_check
      _
    $region35: #{tpu_custom_call.1} parent=1 // pred_check_branch
      %63 = sbr.rel (0) target = $region37
    $region36: #{tpu_custom_call.1} parent=1 // pred_region
      _
    $region37: #{tpu_custom_call.1} parent=1 // pred_fallthru
      _
    // Predicated region
    $region38: #{tpu_custom_call.1} parent=1 // pred_check
      _
    $region39: #{tpu_custom_call.1} parent=1 // pred_check_branch
      %65 = sbr.rel (0) target = $region41
    $region40: #{tpu_custom_call.1} parent=1 // pred_region
      %s67 = ssub.s32 512, 512
      %68 = vsyncadd [#allocation9], %s67
      %s69 = sshll.u32 [#allocation8], 4
      %s70 = int_to_ptr.vmem [resolvable:$true] %s69
      %75 = dma.hbm_to_vmem [thread:$0]  %s9, 512, %s70, [#allocation9], 64, 64, 4
    $region41: #{tpu_custom_call.1} parent=1 // pred_fallthru
      _
    // Predicated region
    $region42: #{tpu_custom_call.1} parent=1 // pred_check
      _
    $region43: #{tpu_custom_call.1} parent=1 // pred_check_branch
      %77 = sbr.rel (0) target = $region45
    $region44: #{tpu_custom_call.1} parent=1 // pred_region
      _
    $region45: #{tpu_custom_call.1} parent=1 // pred_fallthru
      _
    // Predicated region
    $region46: #{tpu_custom_call.1} parent=1 // pred_check
      _
    $region47: #{tpu_custom_call.1} parent=1 // pred_check_branch
      %79 = sbr.rel (0) target = $region49
    $region48: #{tpu_custom_call.1} parent=1 // pred_region
      %80 = dma.done [#allocation3], 64
    $region49: #{tpu_custom_call.1} parent=1 // pred_fallthru
      _
    // Predicated region
    $region50: #{tpu_custom_call.1} parent=1 // pred_check
      _
    $region51: #{tpu_custom_call.1} parent=1 // pred_check_branch
      %82 = sbr.rel (0) target = $region53
    $region52: #{tpu_custom_call.1} parent=1 // pred_region
      %83 = dma.done [#allocation6], 48
    $region53: #{tpu_custom_call.1} parent=1 // pred_fallthru
      _
    // Predicated region
    $region54: #{tpu_custom_call.1} parent=1 // pred_check
      _
    $region55: #{tpu_custom_call.1} parent=1 // pred_check_branch
      %85 = sbr.rel (0) target = $region57
    $region56: #{tpu_custom_call.1} parent=1 // pred_region
      %86 = dma.done [#allocation6], 2432
    $region57: #{tpu_custom_call.1} parent=1 // pred_fallthru
      _
    // Predicated region
    $region58: #{tpu_custom_call.1} parent=1 // pred_check
      _
    $region59: #{tpu_custom_call.1} parent=1 // pred_check_branch
      %88 = sbr.rel (0) target = $region61
    $region60: #{tpu_custom_call.1} parent=1 // pred_region
      %89 = dma.done [#allocation9], 512
    $region61: #{tpu_custom_call.1} parent=1 // pred_fallthru
      _
    %v91 = vld [vmem:[#allocation2] sm:$0xf]
    %v92 = vld [vmem:[%s1] sm:$0xff]
    %v93 = vld [vmem:[%s1 + $0x8] sm:$0xf]
    %v94 = vld [vmem:[%s1 + $0xc] sm:$0xff]
    %v95 = vld [vmem:[%s1 + $0x14] sm:$0xf]
    %v96 = vld [vmem:[%s1 + $0x18] sm:$0xff]
    %v97 = vld [vmem:[%s1 + $0x20] sm:$0xf]
    %v98 = vld [vmem:[%s1 + $0x24] sm:$0xff]
    %v99 = vld [vmem:[%s1 + $0x2c] sm:$0xf]
    %v100 = vld [vmem:[#allocation5] sm:$0x7]
    %v102 = vlaneseq
    %v103 = vshrl.u32 %v102, 7
    %v104 = vsub.s32 0, %v103
    %v105 = vrot.slane %v100, %v104
    %v106 = vlaneseq
    %v107 = vshrl.u32 %v106, 7
    %v108 = vsub.s32 1, %v107
    %v109 = vrot.slane %v100, %v108
    %v110 = vlaneseq
    %v111 = vshrl.u32 %v110, 7
    %v112 = vsub.s32 2, %v111
    %v113 = vrot.slane %v100, %v112
    %v125 = vunpack.c.l.b16 %v92
    %v126 = vunpack.c.h.b16 %v92
    %v127 = vunpack.c.l.b16 %v93
    %v128 = vunpack.c.l.b16 %v94
    %v129 = vunpack.c.h.b16 %v94
    %v130 = vunpack.c.l.b16 %v95
    %v131 = vunpack.c.l.b16 %v96
    %v132 = vunpack.c.h.b16 %v96
    %v133 = vunpack.c.l.b16 %v97
    %v134 = vunpack.c.l.b16 %v98
    %v135 = vunpack.c.h.b16 %v98
    %v136 = vunpack.c.l.b16 %v99
    %v137 = vpack.c.b16 %v128, %v125
    %v138 = vpack.c.b16 %v129, %v126
    %v139 = vpack.c.b16 %v130, %v127
    %v140 = vpack.c.b16 %v134, %v131
    %v141 = vpack.c.b16 %v135, %v132
    %v142 = vpack.c.b16 %v136, %v133
    %vm149 = vcmask 261120
    %v151 = vsel %vm149, %v91, 0
    %153 = vmatprep.subr.bf16.mxu0 0
    %154 = vmatpush1.bf16.msra.mxu0 0
    %155 = vmatprep.subr.bf16.mxu0 0
    %156 = vmatpush1.bf16.msra.mxu0 0
    %157 = vmatprep.subr.bf16.mxu0 0
    %158 = vmatpush1.bf16.msra.mxu0 0
    %159 = vmatprep.subr.bf16.mxu0 0
    %160 = vmatpush1.bf16.msra.mxu0 0
    %161 = vmatprep.subr.bf16.mxu0 0
    %162 = vmatpush1.bf16.msra.mxu0 0
    %163 = vmatprep.subr.bf16.mxu0 0
    %164 = vmatpush1.bf16.msra.mxu0 0
    %165 = vmatprep.subr.bf16.mxu0 %v141
    %166 = vmatpush1.bf16.msra.mxu0 %v140
    %167 = vmatprep.subr.bf16.mxu0 %v138
    %168 = vmatpush1.bf16.msra.mxu0 %v137
    %169 = vmatprep.subr.bf16.mxu0 0
    %170 = vmatpush2.bf16.msra.mxu0 0
    %171 = vmatprep.subr.bf16.mxu0 0
    %172 = vmatpush2.bf16.msra.mxu0 0
    %173 = vmatprep.subr.bf16.mxu0 0
    %174 = vmatpush2.bf16.msra.mxu0 0
    %175 = vmatprep.subr.bf16.mxu0 0
    %176 = vmatpush2.bf16.msra.mxu0 0
    %177 = vmatprep.subr.bf16.mxu0 0
    %178 = vmatpush2.bf16.msra.mxu0 0
    %179 = vmatprep.subr.bf16.mxu0 0
    %180 = vmatpush2.bf16.msra.mxu0 0
    %181 = vmatprep.subr.bf16.mxu0 0
    %182 = vmatpush2.bf16.msra.mxu0 0
    %183 = vmatprep.subr.bf16.mxu0 0
    %184 = vmatpush2.bf16.msra.mxu0 0
    %185 = vmatprep.mubr.bf16.mxu0 0
    %186 = vmatmul.mubr.bf16.gmra.mxu0 %v151
    %v187 = vpop.f32.mrf.mxu0
    %v188 = vadd.f32 %v105, %v187
    %v189 = vpop.f32.mrf.mxu0
    %v190 = vadd.f32 %v109, %v189
    %v191 = vpop.f32.mrf.mxu0
    %v192 = vpop.f32.mrf.mxu0
    %193 = vdwg.mxu0
    %194 = vmatprep.subr.bf16.mxu0 0
    %195 = vmatpush1.bf16.msra.mxu0 0
    %196 = vmatprep.subr.bf16.mxu0 0
    %197 = vmatpush1.bf16.msra.mxu0 0
    %198 = vmatprep.subr.bf16.mxu0 0
    %199 = vmatpush1.bf16.msra.mxu0 0
    %200 = vmatprep.subr.bf16.mxu0 0
    %201 = vmatpush1.bf16.msra.mxu0 0
    %202 = vmatprep.subr.bf16.mxu0 0
    %203 = vmatpush1.bf16.msra.mxu0 0
    %204 = vmatprep.subr.bf16.mxu0 0
    %205 = vmatpush1.bf16.msra.mxu0 0
    %206 = vmatprep.subr.bf16.mxu0 0
    %207 = vmatpush1.bf16.msra.mxu0 %v142
    %208 = vmatprep.subr.bf16.mxu0 0
    %209 = vmatpush1.bf16.msra.mxu0 %v139
    %210 = vmatprep.subr.bf16.mxu0 0
    %211 = vmatpush2.bf16.msra.mxu0 0
    %212 = vmatprep.subr.bf16.mxu0 0
    %213 = vmatpush2.bf16.msra.mxu0 0
    %214 = vmatprep.subr.bf16.mxu0 0
    %215 = vmatpush2.bf16.msra.mxu0 0
    %216 = vmatprep.subr.bf16.mxu0 0
    %217 = vmatpush2.bf16.msra.mxu0 0
    %218 = vmatprep.subr.bf16.mxu0 0
    %219 = vmatpush2.bf16.msra.mxu0 0
    %220 = vmatprep.subr.bf16.mxu0 0
    %221 = vmatpush2.bf16.msra.mxu0 0
    %222 = vmatprep.subr.bf16.mxu0 0
    %223 = vmatpush2.bf16.msra.mxu0 0
    %224 = vmatprep.subr.bf16.mxu0 0
    %225 = vmatpush2.bf16.msra.mxu0 0
    %226 = vmatprep.mubr.bf16.mxu0 0
    %227 = vmatmul.mubr.bf16.gmra.mxu0 %v151
    %v228 = vpop.f32.mrf.mxu0
    %v229 = vadd.f32 %v113, %v228
    %v230 = vpop.f32.mrf.mxu0
    %v231 = vpop.f32.mrf.mxu0
    %v232 = vpop.f32.mrf.mxu0
    %233 = vdwg.mxu0
    %v234 = vmax.f32 %v188, 0.0
    %v235 = vmax.f32 %v190, 0.0
    %v236 = vmax.f32 %v229, 0.0
    %v237 = vpack.c.bf16 %v234, %v234
    %v238 = vpack.c.bf16 %v235, %v235
    %v239 = vpack.c.bf16 %v236, %v236
    %v240 = vld [vmem:[#allocation7] sm:$0xf]
    %v241 = vld [vmem:[#allocation7 + $0x4] sm:$0xf]
    %v242 = vld [vmem:[#allocation7 + $0x8] sm:$0xf]
    %v243 = vld [vmem:[#allocation7 + $0xc] sm:$0xf]
    %v244 = vld [vmem:[#allocation7 + $0x10] sm:$0xf]
    %v245 = vld [vmem:[#allocation7 + $0x14] sm:$0xf]
    %v246 = vld [vmem:[#allocation7 + $0x18] sm:$0xf]
    %v247 = vld [vmem:[#allocation7 + $0x1c] sm:$0xf]
    %v248 = vld [vmem:[#allocation7 + $0x20] sm:$0xf]
    %v249 = vld [vmem:[#allocation7 + $0x24] sm:$0xf]
    %v250 = vld [vmem:[#allocation7 + $0x28] sm:$0xf]
    %v251 = vld [vmem:[#allocation7 + $0x2c] sm:$0xf]
    %v252 = vld [vmem:[#allocation7 + $0x30] sm:$0xf]
    %v253 = vld [vmem:[#allocation7 + $0x34] sm:$0xf]
    %v254 = vld [vmem:[#allocation7 + $0x38] sm:$0xf]
    %v255 = vld [vmem:[#allocation7 + $0x3c] sm:$0xf]
    %v256 = vld [vmem:[#allocation7 + $0x40] sm:$0xf]
    %v257 = vld [vmem:[#allocation7 + $0x44] sm:$0xf]
    %v258 = vld [vmem:[#allocation7 + $0x48] sm:$0xf]
    %v259 = vld [vmem:[#allocation7 + $0x4c] sm:$0xf]
    %v260 = vld [vmem:[#allocation7 + $0x50] sm:$0xf]
    %v261 = vld [vmem:[#allocation7 + $0x54] sm:$0xf]
    %v262 = vld [vmem:[#allocation7 + $0x58] sm:$0xf]
    %v263 = vld [vmem:[#allocation7 + $0x5c] sm:$0xf]
    %v264 = vld [vmem:[#allocation7 + $0x60] sm:$0xf]
    %v265 = vld [vmem:[#allocation7 + $0x64] sm:$0xf]
    %v266 = vld [vmem:[#allocation7 + $0x68] sm:$0xf]
    %v267 = vld [vmem:[#allocation7 + $0x6c] sm:$0xf]
    %v268 = vld [vmem:[#allocation7 + $0x70] sm:$0xf]
    %v269 = vld [vmem:[#allocation7 + $0x74] sm:$0xf]
    %v270 = vld [vmem:[#allocation7 + $0x78] sm:$0xf]
    %v271 = vld [vmem:[#allocation7 + $0x7c] sm:$0xf]
    %v272 = vld [vmem:[#allocation7 + $0x80] sm:$0xf]
    %v273 = vld [vmem:[#allocation7 + $0x84] sm:$0xf]
    %v274 = vld [vmem:[#allocation7 + $0x88] sm:$0xf]
    %v275 = vld [vmem:[#allocation7 + $0x8c] sm:$0xf]
    %v276 = vld [vmem:[#allocation7 + $0x90] sm:$0xf]
    %v277 = vld [vmem:[#allocation7 + $0x94] sm:$0x3]
    %v278 = vld [vmem:[%s4] sm:$0x1]
    %v280 = vlaneseq
    %v281 = vshrl.u32 %v280, 7
    %v282 = vsub.s32 0, %v281
    %v283 = vrot.slane %v278, %v282
    %v323 = vunpack.c.l.b16 %v240
    %v324 = vunpack.c.l.b16 %v241
    %v325 = vunpack.c.l.b16 %v242
    %v326 = vunpack.c.l.b16 %v243
    %v327 = vunpack.c.l.b16 %v244
    %v328 = vunpack.c.l.b16 %v245
    %v329 = vunpack.c.l.b16 %v246
    %v330 = vunpack.c.l.b16 %v247
    %v331 = vunpack.c.l.b16 %v248
    %v332 = vunpack.c.l.b16 %v249
    %v333 = vunpack.c.l.b16 %v250
    %v334 = vunpack.c.l.b16 %v251
    %v335 = vunpack.c.l.b16 %v252
    %v336 = vunpack.c.l.b16 %v253
    %v337 = vunpack.c.l.b16 %v254
    %v338 = vunpack.c.l.b16 %v255
    %v339 = vunpack.c.l.b16 %v256
    %v340 = vunpack.c.l.b16 %v257
    %v341 = vunpack.c.l.b16 %v258
    %v342 = vunpack.c.l.b16 %v259
    %v343 = vunpack.c.l.b16 %v260
    %v344 = vunpack.c.l.b16 %v261
    %v345 = vunpack.c.l.b16 %v262
    %v346 = vunpack.c.l.b16 %v263
    %v347 = vunpack.c.l.b16 %v264
    %v348 = vunpack.c.l.b16 %v265
    %v349 = vunpack.c.l.b16 %v266
    %v350 = vunpack.c.l.b16 %v267
    %v351 = vunpack.c.l.b16 %v268
    %v352 = vunpack.c.l.b16 %v269
    %v353 = vunpack.c.l.b16 %v270
    %v354 = vunpack.c.l.b16 %v271
    %v355 = vunpack.c.l.b16 %v272
    %v356 = vunpack.c.l.b16 %v273
    %v357 = vunpack.c.l.b16 %v274
    %v358 = vunpack.c.l.b16 %v275
    %v359 = vunpack.c.l.b16 %v276
    %v360 = vunpack.c.l.b16 %v277
    %v361 = vpack.c.b16 %v324, %v323
    %v362 = vpack.c.b16 %v326, %v325
    %v363 = vpack.c.b16 %v328, %v327
    %v364 = vpack.c.b16 %v330, %v329
    %v365 = vpack.c.b16 %v332, %v331
    %v366 = vpack.c.b16 %v334, %v333
    %v367 = vpack.c.b16 %v336, %v335
    %v368 = vpack.c.b16 %v338, %v337
    %v369 = vpack.c.b16 %v340, %v339
    %v370 = vpack.c.b16 %v342, %v341
    %v371 = vpack.c.b16 %v344, %v343
    %v372 = vpack.c.b16 %v346, %v345
    %v373 = vpack.c.b16 %v348, %v347
    %v374 = vpack.c.b16 %v350, %v349
    %v375 = vpack.c.b16 %v352, %v351
    %v376 = vpack.c.b16 %v354, %v353
    %v377 = vpack.c.b16 %v356, %v355
    %v378 = vpack.c.b16 %v358, %v357
    %v379 = vpack.c.b16 %v360, %v359
    %vm398 = vcmask 359424
    %v400 = vsel %vm398, %v239, 0
    %vm402 = vcmask 1045504
    %v404 = vsel %vm402, %v379, 0
    %406 = vmatprep.subr.bf16.mxu0 0
    %407 = vmatpush1.bf16.msra.mxu0 %v368
    %408 = vmatprep.subr.bf16.mxu0 0
    %409 = vmatpush1.bf16.msra.mxu0 %v367
    %410 = vmatprep.subr.bf16.mxu0 0
    %411 = vmatpush1.bf16.msra.mxu0 %v366
    %412 = vmatprep.subr.bf16.mxu0 0
    %413 = vmatpush1.bf16.msra.mxu0 %v365
    %414 = vmatprep.subr.bf16.mxu0 0
    %415 = vmatpush1.bf16.msra.mxu0 %v364
    %416 = vmatprep.subr.bf16.mxu0 0
    %417 = vmatpush1.bf16.msra.mxu0 %v363
    %418 = vmatprep.subr.bf16.mxu0 0
    %419 = vmatpush1.bf16.msra.mxu0 %v362
    %420 = vmatprep.subr.bf16.mxu0 0
    %421 = vmatpush1.bf16.msra.mxu0 %v361
    %422 = vmatprep.subr.bf16.mxu0 0
    %423 = vmatpush2.bf16.msra.mxu0 %v376
    %424 = vmatprep.subr.bf16.mxu0 0
    %425 = vmatpush2.bf16.msra.mxu0 %v375
    %426 = vmatprep.subr.bf16.mxu0 0
    %427 = vmatpush2.bf16.msra.mxu0 %v374
    %428 = vmatprep.subr.bf16.mxu0 0
    %429 = vmatpush2.bf16.msra.mxu0 %v373
    %430 = vmatprep.subr.bf16.mxu0 0
    %431 = vmatpush2.bf16.msra.mxu0 %v372
    %432 = vmatprep.subr.bf16.mxu0 0
    %433 = vmatpush2.bf16.msra.mxu0 %v371
    %434 = vmatprep.subr.bf16.mxu0 0
    %435 = vmatpush2.bf16.msra.mxu0 %v370
    %436 = vmatprep.subr.bf16.mxu0 0
    %437 = vmatpush2.bf16.msra.mxu0 %v369
    %438 = vmatprep.mubr.bf16.mxu0 %v238
    %439 = vmatmul.mubr.bf16.gmra.mxu0 %v237
    %v440 = vpop.f32.mrf.mxu0
    %v441 = vadd.f32 %v283, %v440
    %v442 = vpop.f32.mrf.mxu0
    %v443 = vpop.f32.mrf.mxu0
    %v444 = vpop.f32.mrf.mxu0
    %445 = vdwg.mxu0
    %446 = vmatprep.subr.bf16.mxu0 0
    %447 = vmatpush1.bf16.msra.mxu0 0
    %448 = vmatprep.subr.bf16.mxu0 0
    %449 = vmatpush1.bf16.msra.mxu0 0
    %450 = vmatprep.subr.bf16.mxu0 0
    %451 = vmatpush1.bf16.msra.mxu0 0
    %452 = vmatprep.subr.bf16.mxu0 0
    %453 = vmatpush1.bf16.msra.mxu0 0
    %454 = vmatprep.subr.bf16.mxu0 0
    %455 = vmatpush1.bf16.msra.mxu0 0
    %456 = vmatprep.subr.bf16.mxu0 0
    %457 = vmatpush1.bf16.msra.mxu0 %v404
    %458 = vmatprep.subr.bf16.mxu0 0
    %459 = vmatpush1.bf16.msra.mxu0 %v378
    %460 = vmatprep.subr.bf16.mxu0 0
    %461 = vmatpush1.bf16.msra.mxu0 %v377
    %462 = vmatprep.subr.bf16.mxu0 0
    %463 = vmatpush2.bf16.msra.mxu0 0
    %464 = vmatprep.subr.bf16.mxu0 0
    %465 = vmatpush2.bf16.msra.mxu0 0
    %466 = vmatprep.subr.bf16.mxu0 0
    %467 = vmatpush2.bf16.msra.mxu0 0
    %468 = vmatprep.subr.bf16.mxu0 0
    %469 = vmatpush2.bf16.msra.mxu0 0
    %470 = vmatprep.subr.bf16.mxu0 0
    %471 = vmatpush2.bf16.msra.mxu0 0
    %472 = vmatprep.subr.bf16.mxu0 0
    %473 = vmatpush2.bf16.msra.mxu0 0
    %474 = vmatprep.subr.bf16.mxu0 0
    %475 = vmatpush2.bf16.msra.mxu0 0
    %476 = vmatprep.subr.bf16.mxu0 0
    %477 = vmatpush2.bf16.msra.mxu0 0
    %478 = vmatprep.mubr.bf16.mxu0 0
    %479 = vmatmul.mubr.bf16.gmra.mxu0 %v400
    %v480 = vpop.f32.mrf.mxu0
    %v481 = vadd.f32 %v441, %v480
    %v482 = vpop.f32.mrf.mxu0
    %v483 = vpop.f32.mrf.mxu0
    %v484 = vpop.f32.mrf.mxu0
    %485 = vdwg.mxu0
    %v486 = vmax.f32 %v481, 0.0
    %v487 = vpack.c.bf16 %v486, %v486
    %v488 = vld [vmem:[%s5] sm:$0xf]
    %v489 = vld [vmem:[%s5 + $0x4] sm:$0xf]
    %v490 = vld [vmem:[%s5 + $0x8] sm:$0xf]
    %v491 = vld [vmem:[%s5 + $0xc] sm:$0xf]
    %v492 = vld [vmem:[%s5 + $0x10] sm:$0xf]
    %v493 = vld [vmem:[%s5 + $0x14] sm:$0xf]
    %v494 = vld [vmem:[%s5 + $0x18] sm:$0xf]
    %v495 = vld [vmem:[%s5 + $0x1c] sm:$0xf]
    %v496 = vld [vmem:[%s5 + $0x20] sm:$0xf]
    %v497 = vld [vmem:[%s5 + $0x24] sm:$0xf]
    %v498 = vld [vmem:[%s5 + $0x28] sm:$0xf]
    %v499 = vld [vmem:[%s5 + $0x2c] sm:$0xf]
    %v500 = vld [vmem:[%s5 + $0x30] sm:$0x3]
    %v501 = vld [vmem:[%s6] sm:$0x1]
    %v503 = vlaneseq
    %v504 = vshrl.u32 %v503, 7
    %v505 = vsub.s32 0, %v504
    %v506 = vrot.slane %v501, %v505
    %v521 = vunpack.c.l.b16 %v488
    %v522 = vunpack.c.l.b16 %v489
    %v523 = vunpack.c.l.b16 %v490
    %v524 = vunpack.c.l.b16 %v491
    %v525 = vunpack.c.l.b16 %v492
    %v526 = vunpack.c.l.b16 %v493
    %v527 = vunpack.c.l.b16 %v494
    %v528 = vunpack.c.l.b16 %v495
    %v529 = vunpack.c.l.b16 %v496
    %v530 = vunpack.c.l.b16 %v497
    %v531 = vunpack.c.l.b16 %v498
    %v532 = vunpack.c.l.b16 %v499
    %v533 = vunpack.c.l.b16 %v500
    %v534 = vpack.c.b16 %v522, %v521
    %v535 = vpack.c.b16 %v524, %v523
    %v536 = vpack.c.b16 %v526, %v525
    %v537 = vpack.c.b16 %v528, %v527
    %v538 = vpack.c.b16 %v530, %v529
    %v539 = vpack.c.b16 %v532, %v531
    %v540 = vpack.c.b16 %v533, %v533
    %vm547 = vcmask 818176
    %v549 = vsel %vm547, %v487, 0
    %vm551 = vcmask 1041408
    %v553 = vsel %vm551, %v540, 0
    %555 = vmatprep.subr.bf16.mxu0 0
    %556 = vmatpush1.bf16.msra.mxu0 0
    %557 = vmatprep.subr.bf16.mxu0 0
    %558 = vmatpush1.bf16.msra.mxu0 %v553
    %559 = vmatprep.subr.bf16.mxu0 0
    %560 = vmatpush1.bf16.msra.mxu0 %v539
    %561 = vmatprep.subr.bf16.mxu0 0
    %562 = vmatpush1.bf16.msra.mxu0 %v538
    %563 = vmatprep.subr.bf16.mxu0 0
    %564 = vmatpush1.bf16.msra.mxu0 %v537
    %565 = vmatprep.subr.bf16.mxu0 0
    %566 = vmatpush1.bf16.msra.mxu0 %v536
    %567 = vmatprep.subr.bf16.mxu0 0
    %568 = vmatpush1.bf16.msra.mxu0 %v535
    %569 = vmatprep.subr.bf16.mxu0 0
    %570 = vmatpush1.bf16.msra.mxu0 %v534
    %571 = vmatprep.subr.bf16.mxu0 0
    %572 = vmatpush2.bf16.msra.mxu0 0
    %573 = vmatprep.subr.bf16.mxu0 0
    %574 = vmatpush2.bf16.msra.mxu0 0
    %575 = vmatprep.subr.bf16.mxu0 0
    %576 = vmatpush2.bf16.msra.mxu0 0
    %577 = vmatprep.subr.bf16.mxu0 0
    %578 = vmatpush2.bf16.msra.mxu0 0
    %579 = vmatprep.subr.bf16.mxu0 0
    %580 = vmatpush2.bf16.msra.mxu0 0
    %581 = vmatprep.subr.bf16.mxu0 0
    %582 = vmatpush2.bf16.msra.mxu0 0
    %583 = vmatprep.subr.bf16.mxu0 0
    %584 = vmatpush2.bf16.msra.mxu0 0
    %585 = vmatprep.subr.bf16.mxu0 0
    %586 = vmatpush2.bf16.msra.mxu0 0
    %587 = vmatprep.mubr.bf16.mxu0 0
    %588 = vmatmul.mubr.bf16.gmra.mxu0 %v549
    %v589 = vpop.f32.mrf.mxu0
    %v590 = vadd.f32 %v506, %v589
    %v591 = vpop.f32.mrf.mxu0
    %v592 = vpop.f32.mrf.mxu0
    %v593 = vpop.f32.mrf.mxu0
    %594 = vdwg.mxu0
    %v595 = vmax.f32 %v590, 0.0
    %v596 = vpack.c.bf16 %v595, %v595
    %v597 = vld [vmem:[%s7] sm:$0xf]
    %v598 = vld [vmem:[%s7 + $0x4] sm:$0xf]
    %v599 = vld [vmem:[%s7 + $0x8] sm:$0xf]
    %v600 = vld [vmem:[%s7 + $0xc] sm:$0xf]
    %v601 = vld [vmem:[%s7 + $0x10] sm:$0xf]
    %v602 = vld [vmem:[%s7 + $0x14] sm:$0xf]
    %v603 = vld [vmem:[%s7 + $0x18] sm:$0xf]
    %v604 = vld [vmem:[%s7 + $0x1c] sm:$0xf]
    %v605 = vld [vmem:[%s7 + $0x20] sm:$0xf]
    %v606 = vld [vmem:[%s7 + $0x24] sm:$0xf]
    %v607 = vld [vmem:[%s7 + $0x28] sm:$0xf]
    %v608 = vld [vmem:[%s7 + $0x2c] sm:$0xf]
    %v609 = vld [vmem:[%s7 + $0x30] sm:$0xf]
    %v610 = vld [vmem:[%s7 + $0x34] sm:$0xf]
    %v611 = vld [vmem:[%s7 + $0x38] sm:$0xf]
    %v612 = vld [vmem:[%s8] sm:$0x1]
    %v614 = vlaneseq
    %v615 = vshrl.u32 %v614, 7
    %v616 = vsub.s32 0, %v615
    %v617 = vrot.slane %v612, %v616
    %v634 = vunpack.c.l.b16 %v597
    %v635 = vunpack.c.l.b16 %v598
    %v636 = vunpack.c.l.b16 %v599
    %v637 = vunpack.c.l.b16 %v600
    %v638 = vunpack.c.l.b16 %v601
    %v639 = vunpack.c.l.b16 %v602
    %v640 = vunpack.c.l.b16 %v603
    %v641 = vunpack.c.l.b16 %v604
    %v642 = vunpack.c.l.b16 %v605
    %v643 = vunpack.c.l.b16 %v606
    %v644 = vunpack.c.l.b16 %v607
    %v645 = vunpack.c.l.b16 %v608
    %v646 = vunpack.c.l.b16 %v609
    %v647 = vunpack.c.l.b16 %v610
    %v648 = vunpack.c.l.b16 %v611
    %v649 = vpack.c.b16 %v635, %v634
    %v650 = vpack.c.b16 %v637, %v636
    %v651 = vpack.c.b16 %v639, %v638
    %v652 = vpack.c.b16 %v641, %v640
    %v653 = vpack.c.b16 %v643, %v642
    %v654 = vpack.c.b16 %v645, %v644
    %v655 = vpack.c.b16 %v647, %v646
    %v656 = vpack.c.b16 %v648, %v648
    %vm664 = vcmask 982016
    %v666 = vsel %vm664, %v596, 0
    %vm668 = vcmask 1043456
    %v670 = vsel %vm668, %v656, 0
    %672 = vmatprep.subr.bf16.mxu0 0
    %673 = vmatpush1.bf16.msra.mxu0 %v670
    %674 = vmatprep.subr.bf16.mxu0 0
    %675 = vmatpush1.bf16.msra.mxu0 %v655
    %676 = vmatprep.subr.bf16.mxu0 0
    %677 = vmatpush1.bf16.msra.mxu0 %v654
    %678 = vmatprep.subr.bf16.mxu0 0
    %679 = vmatpush1.bf16.msra.mxu0 %v653
    %680 = vmatprep.subr.bf16.mxu0 0
    %681 = vmatpush1.bf16.msra.mxu0 %v652
    %682 = vmatprep.subr.bf16.mxu0 0
    %683 = vmatpush1.bf16.msra.mxu0 %v651
    %684 = vmatprep.subr.bf16.mxu0 0
    %685 = vmatpush1.bf16.msra.mxu0 %v650
    %686 = vmatprep.subr.bf16.mxu0 0
    %687 = vmatpush1.bf16.msra.mxu0 %v649
    %688 = vmatprep.subr.bf16.mxu0 0
    %689 = vmatpush2.bf16.msra.mxu0 0
    %690 = vmatprep.subr.bf16.mxu0 0
    %691 = vmatpush2.bf16.msra.mxu0 0
    %692 = vmatprep.subr.bf16.mxu0 0
    %693 = vmatpush2.bf16.msra.mxu0 0
    %694 = vmatprep.subr.bf16.mxu0 0
    %695 = vmatpush2.bf16.msra.mxu0 0
    %696 = vmatprep.subr.bf16.mxu0 0
    %697 = vmatpush2.bf16.msra.mxu0 0
    %698 = vmatprep.subr.bf16.mxu0 0
    %699 = vmatpush2.bf16.msra.mxu0 0
    %700 = vmatprep.subr.bf16.mxu0 0
    %701 = vmatpush2.bf16.msra.mxu0 0
    %702 = vmatprep.subr.bf16.mxu0 0
    %703 = vmatpush2.bf16.msra.mxu0 0
    %704 = vmatprep.mubr.bf16.mxu0 0
    %705 = vmatmul.mubr.bf16.gmra.mxu0 %v666
    %v706 = vpop.f32.mrf.mxu0
    %v707 = vadd.f32 %v617, %v706
    %v708 = vpop.f32.mrf.mxu0
    %v709 = vpop.f32.mrf.mxu0
    %v710 = vpop.f32.mrf.mxu0
    %711 = vdwg.mxu0
    %v712 = vmax.f32 %v707, 0.0
    %v713 = vpack.c.bf16 %v712, %v712
    %v714 = vld [vmem:[#allocation8] sm:$0xf]
    %v715 = vld [vmem:[#allocation8 + $0x4] sm:$0xf]
    %v716 = vld [vmem:[#allocation8 + $0x8] sm:$0xf]
    %v717 = vld [vmem:[#allocation8 + $0xc] sm:$0xf]
    %v718 = vld [vmem:[#allocation8 + $0x10] sm:$0xf]
    %v719 = vld [vmem:[#allocation8 + $0x14] sm:$0xf]
    %v720 = vld [vmem:[#allocation8 + $0x18] sm:$0xf]
    %v721 = vld [vmem:[#allocation8 + $0x1c] sm:$0x3]
    %v722 = vld [vmem:[%s10] sm:$0x1]
    %v724 = vlaneseq
    %v725 = vshrl.u32 %v724, 7
    %v726 = vsub.s32 0, %v725
    %v727 = vrot.slane %v722, %v726
    %v737 = vunpack.c.l.b16 %v714
    %v738 = vunpack.c.l.b16 %v715
    %v739 = vunpack.c.l.b16 %v716
    %v740 = vunpack.c.l.b16 %v717
    %v741 = vunpack.c.l.b16 %v718
    %v742 = vunpack.c.l.b16 %v719
    %v743 = vunpack.c.l.b16 %v720
    %v744 = vunpack.c.l.b16 %v721
    %v745 = vpack.c.b16 %v738, %v737
    %v746 = vpack.c.b16 %v740, %v739
    %v747 = vpack.c.b16 %v742, %v741
    %v748 = vpack.c.b16 %v744, %v743
    %vm752 = vcmask 490496
    %v754 = vsel %vm752, %v713, 0
    %v757 = vsel %vm402, %v748, 0
    %759 = vmatprep.subr.bf16.mxu0 0
    %760 = vmatpush1.bf16.msra.mxu0 0
    %761 = vmatprep.subr.bf16.mxu0 0
    %762 = vmatpush1.bf16.msra.mxu0 0
    %763 = vmatprep.subr.bf16.mxu0 0
    %764 = vmatpush1.bf16.msra.mxu0 0
    %765 = vmatprep.subr.bf16.mxu0 0
    %766 = vmatpush1.bf16.msra.mxu0 0
    %767 = vmatprep.subr.bf16.mxu0 0
    %768 = vmatpush1.bf16.msra.mxu0 %v757
    %769 = vmatprep.subr.bf16.mxu0 0
    %770 = vmatpush1.bf16.msra.mxu0 %v747
    %771 = vmatprep.subr.bf16.mxu0 0
    %772 = vmatpush1.bf16.msra.mxu0 %v746
    %773 = vmatprep.subr.bf16.mxu0 0
    %774 = vmatpush1.bf16.msra.mxu0 %v745
    %775 = vmatprep.subr.bf16.mxu0 0
    %776 = vmatpush2.bf16.msra.mxu0 0
    %777 = vmatprep.subr.bf16.mxu0 0
    %778 = vmatpush2.bf16.msra.mxu0 0
    %779 = vmatprep.subr.bf16.mxu0 0
    %780 = vmatpush2.bf16.msra.mxu0 0
    %781 = vmatprep.subr.bf16.mxu0 0
    %782 = vmatpush2.bf16.msra.mxu0 0
    %783 = vmatprep.subr.bf16.mxu0 0
    %784 = vmatpush2.bf16.msra.mxu0 0
    %785 = vmatprep.subr.bf16.mxu0 0
    %786 = vmatpush2.bf16.msra.mxu0 0
    %787 = vmatprep.subr.bf16.mxu0 0
    %788 = vmatpush2.bf16.msra.mxu0 0
    %789 = vmatprep.subr.bf16.mxu0 0
    %790 = vmatpush2.bf16.msra.mxu0 0
    %791 = vmatprep.mubr.bf16.mxu0 0
    %792 = vmatmul.mubr.bf16.gmra.mxu0 %v754
    %v793 = vpop.f32.mrf.mxu0
    %v794 = vadd.f32 %v727, %v793
    %v795 = vpop.f32.mrf.mxu0
    %v796 = vpop.f32.mrf.mxu0
    %v797 = vpop.f32.mrf.mxu0
    %798 = vdwg.mxu0
    %799 = vst [vmem:[#allocation10] sm:$0xff] %v794
    // Predicated region
    $region62: #{tpu_custom_call.1} parent=1 // pred_check
      _
    $region63: #{tpu_custom_call.1} parent=1 // pred_check_branch
      %801 = sbr.rel (0) target = $region65
    $region64: #{tpu_custom_call.1} parent=1 // pred_region
      %s803 = ssub.s32 128, 128
      %804 = vsyncadd [#allocation4], %s803
      %s806 = sshll.u32 [#allocation10], 4
      %s807 = int_to_ptr.vmem [resolvable:$true] %s806
      %809 = dma.vmem_to_hbm [thread:$0]  %s807, 128, %s11, [#allocation4]
    $region65: #{tpu_custom_call.1} parent=1 // pred_fallthru
      _
    // Predicated region
    $region66: #{tpu_custom_call.1} parent=1 // pred_check
      _
    $region67: #{tpu_custom_call.1} parent=1 // pred_check_branch
      %811 = sbr.rel (0) target = $region69
    $region68: #{tpu_custom_call.1} parent=1 // pred_region
      %812 = dma.done [#allocation4], 128
    $region69: #{tpu_custom_call.1} parent=1 // pred_fallthru
      _
    %813 = vsyncpa [#allocation3], 1
    %814 = vsyncpa [#allocation6], 1
    %815 = vsyncpa [#allocation9], 1
    %816 = vsyncpa [#allocation4], 1

</llo_original>
